<compile_context>
chip_gen: v7x
topology: tpu7x:2x2x1
jax: 0.10.0
libtpu: 0.0.40
codegen_flags: <defaults>
</compile_context>

<pallas_src>
import functools
import math

import jax
import jax.numpy as jnp
from jax.experimental import pallas as pl
from jax.experimental.pallas import tpu as pltpu


def mha_kernel(*refs, G: int, d_k: int, mask_mode: str):
    """Grid = (batch, q_block, head_group).

    Each step runs attention for G packed heads of one (batch, q-block) and
    accumulates their output-projection contribution directly into the
    resident output block (head_group is the innermost reduction axis).
    Per-group K/V projections are computed once per batch (q_block == 0) and
    cached in VMEM scratch for the remaining q blocks.
    """
    if mask_mode == "array":
        (q_ref, k_ref, v_ref, mask_ref, wqkv_ref, wo_ref,
         o_ref, kh_ref, vh_ref) = refs
    else:
        (q_ref, k_ref, v_ref, wqkv_ref, wo_ref,
         o_ref, kh_ref, vh_ref) = refs
        mask_ref = None

    qi = pl.program_id(1)
    hg = pl.program_id(2)

    f32 = jnp.float32
    bf16 = jnp.bfloat16
    dn_nt = (((1,), (0,)), ((), ()))   # A @ B
    dn_tt = (((1,), (1,)), ((), ()))   # A @ B.T without materializing B.T

    # --- K/V projections for this head group: once per batch, cached. --------
    @pl.when(qi == 0)
    def _():
        k = k_ref[0]                                    # (S, D) bf16
        v = v_ref[0]
        kh_ref[hg] = jax.lax.dot_general(
            k, wqkv_ref[1, 0], dn_nt, preferred_element_type=f32).astype(bf16)
        vh_ref[hg] = jax.lax.dot_general(
            v, wqkv_ref[2, 0], dn_nt, preferred_element_type=f32).astype(bf16)

    # --- Q projection for this q block (1/sqrt(d_k) folded into Wq). ---------
    q = q_ref[0]                                        # (TQ, D) bf16
    qh = jax.lax.dot_general(
        q, wqkv_ref[0, 0], dn_nt, preferred_element_type=f32).astype(bf16)  # (TQ, Gd)
    kh = kh_ref[hg]                                     # (S, Gd) bf16
    vh = vh_ref[hg]                                     # (S, Gd) bf16

    TQ = qh.shape[0]
    S = kh.shape[0]

    # Mask -> boolean keep matrix, computed once per grid step (not per head).
    if mask_mode == "array":
        keep = mask_ref[...] != 0
    elif mask_mode == "causal":
        rows = jax.lax.broadcasted_iota(jnp.int32, (TQ, S), 0) + qi * TQ
        cols = jax.lax.broadcasted_iota(jnp.int32, (TQ, S), 1)
        keep = cols <= rows
    else:
        keep = None
    neg = jnp.float32(-1e9)

    # --- Per-head scaled dot-product attention (static unroll over G heads). -
    ctxs = []
    for g in range(G):
        sl = slice(g * d_k, (g + 1) * d_k)
        s = jax.lax.dot_general(qh[:, sl], kh[:, sl], dn_tt,
                                preferred_element_type=f32)          # (TQ, S)
        if keep is not None:
            s = jnp.where(keep, s, neg)
        m = jnp.max(s, axis=-1, keepdims=True)
        e = jnp.exp(s - m)
        # Softmax denominator on the EUP (~1e-3 rel err; use approx=False for a
        # tighter-accuracy validation mode).
        p = e * pl.reciprocal(jnp.sum(e, axis=-1, keepdims=True), approx=True)
        # TODO(synk): dropout on attention weights is a no-op here.
        ctxs.append(jax.lax.dot_general(p.astype(bf16), vh[:, sl], dn_nt,
                                        preferred_element_type=f32).astype(bf16))
    ctx = ctxs[0] if G == 1 else jnp.concatenate(ctxs, axis=-1)       # (TQ, Gd)

    # This head group's contribution through its W_o slice (contraction G*d_k),
    # accumulated directly into the resident f32 output block.
    contrib = jax.lax.dot_general(ctx, wo_ref[0], dn_nt,
                                  preferred_element_type=f32)         # (TQ, D)

    @pl.when(hg == 0)
    def _():
        o_ref[0] = contrib.astype(o_ref.dtype)

    @pl.when(hg != 0)
    def _():
        o_ref[0] = o_ref[0] + contrib.astype(o_ref.dtype)


def _pick_q_tile(S: int, score_budget_bytes: int = 8 << 20) -> int:
    """Largest q tile dividing S that keeps the live (TQ, S) score-path
    intermediates (~14*TQ*S bytes: s/e/p in f32 + bf16 p) within budget."""
    cap = max(8, score_budget_bytes // (14 * S))
    for t in (512, 256, 128, 64, 32, 16, 8):
        if t <= S and t <= cap and S % t == 0:
            return t
    return S


def multi_head_attention(q, k, v, mask, wq, wk, wv, wo, h: int, *,
                         causal: bool = False, mxu_lane_target: int = 128):
    """q,k,v: (B,S,D) f32; mask: (S,S) keep-mask (or None); w*: torch (out,in).

    If causal=True the causal mask is generated in-kernel and `mask` is ignored.
    """
    B, S, D = q.shape
    assert D % h == 0, "d_model must be divisible by h"
    d_k = D // h

    # Head packing: G heads per grid step so the packed projections / W_o
    # contraction are >= mxu_lane_target lanes wide (128 saturates v5e's MXU;
    # pass 256 on v6e/v7x if desired).
    G = max(1, min(h, mxu_lane_target // max(d_k, 1)))
    while h % G:
        G -= 1
    Gd = G * d_k
    NHG = h // G

    TQ = _pick_q_tile(S)
    NQ = S // TQ
    scale = 1.0 / math.sqrt(d_k)

    # --- weight layout prep (once, outside the kernel) ------------------------
    # nn.Linear computes x @ W.T; reshape W.T into per-head-group, lane-dense
    # slices. The 1/sqrt(d_k) scale is folded into Wq here (free).
    def per_group(w, s=1.0):                     # (D_out, D_in) -> (NHG, D, Gd)
        return (w.T * s).reshape(D, NHG, Gd).transpose(1, 0, 2)

    wqkv = jnp.stack([per_group(wq, scale), per_group(wk), per_group(wv)]
                     ).astype(jnp.bfloat16)                   # (3, NHG, D, Gd)
    wo_h = wo.T.reshape(NHG, Gd, D).astype(jnp.bfloat16)      # (NHG, Gd, D)

    q_bf = q.astype(jnp.bfloat16)
    k_bf = k.astype(jnp.bfloat16)
    v_bf = v.astype(jnp.bfloat16)

    if causal:
        mask_mode = "causal"
    elif mask is None:
        mask_mode = "none"
    else:
        mask_mode = "array"

    # K/V block indices only change with the batch; single-buffer them when
    # large (saves 4*S*D bytes of VMEM, one exposed DMA per batch).
    single_buffer_kv = (S * D * 2) > (4 << 20)
    kv_kwargs = {"pipeline_mode": pl.Buffered(1)} if single_buffer_kv else {}

    in_specs = [
        pl.BlockSpec((1, TQ, D), lambda b, qi, hg: (b, qi, 0)),              # q
        pl.BlockSpec((1, S, D), lambda b, qi, hg: (b, 0, 0), **kv_kwargs),   # k
        pl.BlockSpec((1, S, D), lambda b, qi, hg: (b, 0, 0), **kv_kwargs),   # v
    ]
    inputs = [q_bf, k_bf, v_bf]
    if mask_mode == "array":
        mask_bf = (jnp.asarray(mask).reshape(S, S) != 0).astype(jnp.bfloat16)
        in_specs.append(pl.BlockSpec((TQ, S), lambda b, qi, hg: (qi, 0)))    # mask
        inputs.append(mask_bf)
    in_specs += [
        pl.BlockSpec((3, 1, D, Gd), lambda b, qi, hg: (0, hg, 0, 0)),        # Wq/Wk/Wv
        pl.BlockSpec((1, Gd, D), lambda b, qi, hg: (hg, 0, 0)),              # Wo
    ]
    inputs += [wqkv, wo_h]

    # --- explicit VMEM budget --------------------------------------------------
    kv_bufs = 1 if single_buffer_kv else 2
    vmem_est = (
        2 * TQ * D * 2                         # q blocks (bf16, double buffered)
        + 2 * kv_bufs * S * D * 2              # k + v blocks
        + (2 * TQ * S * 2 if mask_mode == "array" else 0)
        + 2 * 3 * D * Gd * 2 + 2 * Gd * D * 2  # weight blocks
        + 2 * TQ * D * 4                       # output block (f32)
        + 2 * NHG * S * Gd * 2                 # K/V projection cache scratch
        + 14 * TQ * S                          # live score-path values
        + 4 * (TQ + 2 * S) * Gd                # projection temporaries (f32)
    )
    vmem_limit = int(min(64 << 20, max(32 << 20, round(vmem_est * 1.4))))

    kernel = functools.partial(mha_kernel, G=G, d_k=d_k, mask_mode=mask_mode)

    return pl.pallas_call(
        kernel,
        out_shape=jax.ShapeDtypeStruct((B, S, D), q.dtype),
        grid_spec=pltpu.PrefetchScalarGridSpec(
            num_scalar_prefetch=0,
            grid=(B, NQ, NHG),
            in_specs=in_specs,
            out_specs=pl.BlockSpec((1, TQ, D), lambda b, qi, hg: (b, qi, 0)),
            scratch_shapes=[pltpu.VMEM((NHG, S, Gd), jnp.bfloat16),   # Kh cache
                            pltpu.VMEM((NHG, S, Gd), jnp.bfloat16)],  # Vh cache
        ),
        # q_block must stay 'arbitrary': the K/V cache is filled at q_block == 0
        # and reused by later q blocks of the same batch, so q_block cannot be
        # megacore-sharded. Batch stays 'parallel' (B >= 2 feeds both v7x TCs).
        compiler_params=pltpu.CompilerParams(
            dimension_semantics=("parallel", "arbitrary", "arbitrary"),
            vmem_limit_bytes=vmem_limit),
    )(*inputs)


def reference_mha(q, k, v, mask, wq, wk, wv, wo, h: int):
    """Pure-JAX f32 reference mirroring the PyTorch forward (dropout = identity)."""
    B, S, D = q.shape
    d_k = D // h
    Q = (q @ wq.T).reshape(B, S, h, d_k).transpose(0, 2, 1, 3)
    K = (k @ wk.T).reshape(B, S, h, d_k).transpose(0, 2, 1, 3)
    V = (v @ wv.T).reshape(B, S, h, d_k).transpose(0, 2, 1, 3)
    s = jnp.einsum("bhqd,bhkd->bhqk", Q, K) / math.sqrt(d_k)
    if mask is not None:
        s = jnp.where(mask[None, None] == 0, -1e9, s)
    p = jax.nn.softmax(s, axis=-1)
    x = jnp.einsum("bhqk,bhkd->bhqd", p, V)
    x = x.transpose(0, 2, 1, 3).reshape(B, S, D)
    return x @ wo.T


if __name__ == "__main__":
    B, S, d_model, h = 2, 8, 32, 4

    key = jax.random.PRNGKey(0)
    kq, kk, kv_, kwq, kwk, kwv, kwo = jax.random.split(key, 7)

    q = jax.random.normal(kq, (B, S, d_model), dtype=jnp.float32)
    k = jax.random.normal(kk, (B, S, d_model), dtype=jnp.float32)
    v = jax.random.normal(kv_, (B, S, d_model), dtype=jnp.float32)

    # Deterministic "nn.Linear" weights, PyTorch layout (out_features, in_features).
    bound = 1.0 / math.sqrt(d_model)
    wq = jax.random.uniform(kwq, (d_model, d_model), jnp.float32, -bound, bound)
    wk = jax.random.uniform(kwk, (d_model, d_model), jnp.float32, -bound, bound)
    wv = jax.random.uniform(kwv, (d_model, d_model), jnp.float32, -bound, bound)
    wo = jax.random.uniform(kwo, (d_model, d_model), jnp.float32, -bound, bound)

    # Causal mask (seq, seq): 1 = keep, 0 = masked.
    mask = jnp.tril(jnp.ones((S, S), dtype=jnp.int32))

    ref = reference_mha(q, k, v, mask, wq, wk, wv, wo, h)

    # Path 1: explicit mask argument (module semantics).
    out = multi_head_attention(q, k, v, mask, wq, wk, wv, wo, h)
    out = jax.block_until_ready(out)
    assert out.shape == (B, S, d_model)
    # bf16 matmul operands (f32 accumulate) -> looser tolerance than pure f32.
    assert jnp.allclose(out, ref, atol=5e-2, rtol=5e-2), float(jnp.max(jnp.abs(out - ref)))

    # Path 2: in-kernel causal mask (no (S, S) mask array materialized at all).
    out_c = multi_head_attention(q, k, v, None, wq, wk, wv, wo, h, causal=True)
    out_c = jax.block_until_ready(out_c)
    assert jnp.allclose(out_c, ref, atol=5e-2, rtol=5e-2), float(jnp.max(jnp.abs(out_c - ref)))

    print("KERNEL_OK")
</pallas_src>

<mosaic_0001>
module attributes {stable_mosaic.version = 11 : i64} {
  func.func @mha_kernel(%arg0: i32, %arg1: i32, %arg2: i32, %arg3: memref<1x8x32xbf16, #tpu.memory_space<vmem>>, %arg4: memref<1x8x32xbf16, #tpu.memory_space<vmem>>, %arg5: memref<1x8x32xbf16, #tpu.memory_space<vmem>>, %arg6: memref<8x8xbf16, #tpu.memory_space<vmem>>, %arg7: memref<3x1x32x32xbf16, #tpu.memory_space<vmem>>, %arg8: memref<1x32x32xbf16, #tpu.memory_space<vmem>>, %arg9: memref<1x8x32xf32, #tpu.memory_space<vmem>>, %arg10: memref<1x8x32xbf16, #tpu.memory_space<vmem>>, %arg11: memref<1x8x32xbf16, #tpu.memory_space<vmem>>) attributes {dimension_semantics = [#tpu.dimension_semantics<parallel>, #tpu.dimension_semantics<arbitrary>, #tpu.dimension_semantics<arbitrary>], iteration_bounds = array<i64: 2, 1, 1>, scalar_prefetch = 0 : i64, scratch_operands = 2 : i64, tpu.core_type = #tpu.core_type<tc>, window_params = [{transform_indices = @transform_0, window_bounds = array<i64: 1, 8, 32>}, {transform_indices = @transform_1, window_bounds = array<i64: 1, 8, 32>}, {transform_indices = @transform_2, window_bounds = array<i64: 1, 8, 32>}, {transform_indices = @transform_3, window_bounds = array<i64: 8, 8>}, {transform_indices = @transform_4, window_bounds = array<i64: 3, 1, 32, 32>}, {transform_indices = @transform_5, window_bounds = array<i64: 1, 32, 32>}, {transform_indices = @transform_6, window_bounds = array<i64: 1, 8, 32>}]} {
    %c0_i32 = arith.constant 0 : i32
    %0 = arith.cmpi eq, %arg1, %c0_i32 : i32
    %1 = arith.extui %0 : i1 to i32
    %c0_i32_0 = arith.constant 0 : i32
    %2 = arith.cmpi ne, %1, %c0_i32_0 : i32
    scf.if %2 {
      %c0_42 = arith.constant 0 : index
      %c0_43 = arith.constant 0 : index
      %c0_44 = arith.constant 0 : index
      %104 = vector.load %arg4[%c0_42, %c0_43, %c0_44] : memref<1x8x32xbf16, #tpu.memory_space<vmem>>, vector<1x8x32xbf16>
      %105 = vector.shape_cast %104 : vector<1x8x32xbf16> to vector<8x32xbf16>
      %c0_45 = arith.constant 0 : index
      %c0_46 = arith.constant 0 : index
      %c0_47 = arith.constant 0 : index
      %106 = vector.load %arg5[%c0_45, %c0_46, %c0_47] : memref<1x8x32xbf16, #tpu.memory_space<vmem>>, vector<1x8x32xbf16>
      %107 = vector.shape_cast %106 : vector<1x8x32xbf16> to vector<8x32xbf16>
      %c1 = arith.constant 1 : index
      %c0_48 = arith.constant 0 : index
      %c0_49 = arith.constant 0 : index
      %c0_50 = arith.constant 0 : index
      %108 = vector.load %arg7[%c1, %c0_48, %c0_49, %c0_50] : memref<3x1x32x32xbf16, #tpu.memory_space<vmem>>, vector<1x1x32x32xbf16>
      %109 = vector.shape_cast %108 : vector<1x1x32x32xbf16> to vector<32x32xbf16>
      %cst_51 = arith.constant dense<0.000000e+00> : vector<8x32xf32>
      %110 = tpu.matmul %105, %109, %cst_51 {dimension_numbers = #tpu.dot_dimension_numbers<[1], [0], [0], [1], [0, 0, 1, 1], [], []>} : vector<8x32xbf16>, vector<32x32xbf16>, vector<8x32xf32> -> vector<8x32xf32>
      %111 = arith.truncf %110 : vector<8x32xf32> to vector<8x32xbf16>
      %112 = arith.index_cast %arg2 : i32 to index
      %c0_52 = arith.constant 0 : index
      %c0_53 = arith.constant 0 : index
      %113 = vector.load %arg10[%112, %c0_52, %c0_53] : memref<1x8x32xbf16, #tpu.memory_space<vmem>>, vector<1x8x32xbf16>
      %114 = vector.shape_cast %113 : vector<1x8x32xbf16> to vector<8x32xbf16>
      %115 = vector.shape_cast %111 : vector<8x32xbf16> to vector<1x8x32xbf16>
      tpu.vector_store %arg10[%112, %c0_52, %c0_53], %115 {strides = array<i32>} : memref<1x8x32xbf16, #tpu.memory_space<vmem>>, vector<1x8x32xbf16>,
      %c2 = arith.constant 2 : index
      %c0_54 = arith.constant 0 : index
      %c0_55 = arith.constant 0 : index
      %c0_56 = arith.constant 0 : index
      %116 = vector.load %arg7[%c2, %c0_54, %c0_55, %c0_56] : memref<3x1x32x32xbf16, #tpu.memory_space<vmem>>, vector<1x1x32x32xbf16>
      %117 = vector.shape_cast %116 : vector<1x1x32x32xbf16> to vector<32x32xbf16>
      %cst_57 = arith.constant dense<0.000000e+00> : vector<8x32xf32>
      %118 = tpu.matmul %107, %117, %cst_57 {dimension_numbers = #tpu.dot_dimension_numbers<[1], [0], [0], [1], [0, 0, 1, 1], [], []>} : vector<8x32xbf16>, vector<32x32xbf16>, vector<8x32xf32> -> vector<8x32xf32>
      %119 = arith.truncf %118 : vector<8x32xf32> to vector<8x32xbf16>
      %120 = arith.index_cast %arg2 : i32 to index
      %c0_58 = arith.constant 0 : index
      %c0_59 = arith.constant 0 : index
      %121 = vector.load %arg11[%120, %c0_58, %c0_59] : memref<1x8x32xbf16, #tpu.memory_space<vmem>>, vector<1x8x32xbf16>
      %122 = vector.shape_cast %121 : vector<1x8x32xbf16> to vector<8x32xbf16>
      %123 = vector.shape_cast %119 : vector<8x32xbf16> to vector<1x8x32xbf16>
      tpu.vector_store %arg11[%120, %c0_58, %c0_59], %123 {strides = array<i32>} : memref<1x8x32xbf16, #tpu.memory_space<vmem>>, vector<1x8x32xbf16>,
    } else {
    }
    %c0 = arith.constant 0 : index
    %c0_1 = arith.constant 0 : index
    %c0_2 = arith.constant 0 : index
    %3 = vector.load %arg3[%c0, %c0_1, %c0_2] : memref<1x8x32xbf16, #tpu.memory_space<vmem>>, vector<1x8x32xbf16>
    %4 = vector.shape_cast %3 : vector<1x8x32xbf16> to vector<8x32xbf16>
    %c0_3 = arith.constant 0 : index
    %c0_4 = arith.constant 0 : index
    %c0_5 = arith.constant 0 : index
    %c0_6 = arith.constant 0 : index
    %5 = vector.load %arg7[%c0_3, %c0_4, %c0_5, %c0_6] : memref<3x1x32x32xbf16, #tpu.memory_space<vmem>>, vector<1x1x32x32xbf16>
    %6 = vector.shape_cast %5 : vector<1x1x32x32xbf16> to vector<32x32xbf16>
    %cst = arith.constant dense<0.000000e+00> : vector<8x32xf32>
    %7 = tpu.matmul %4, %6, %cst {dimension_numbers = #tpu.dot_dimension_numbers<[1], [0], [0], [1], [0, 0, 1, 1], [], []>} : vector<8x32xbf16>, vector<32x32xbf16>, vector<8x32xf32> -> vector<8x32xf32>
    %8 = arith.truncf %7 : vector<8x32xf32> to vector<8x32xbf16>
    %9 = arith.index_cast %arg2 : i32 to index
    %c0_7 = arith.constant 0 : index
    %c0_8 = arith.constant 0 : index
    %10 = vector.load %arg10[%9, %c0_7, %c0_8] : memref<1x8x32xbf16, #tpu.memory_space<vmem>>, vector<1x8x32xbf16>
    %11 = vector.shape_cast %10 : vector<1x8x32xbf16> to vector<8x32xbf16>
    %12 = arith.index_cast %arg2 : i32 to index
    %c0_9 = arith.constant 0 : index
    %c0_10 = arith.constant 0 : index
    %13 = vector.load %arg11[%12, %c0_9, %c0_10] : memref<1x8x32xbf16, #tpu.memory_space<vmem>>, vector<1x8x32xbf16>
    %14 = vector.shape_cast %13 : vector<1x8x32xbf16> to vector<8x32xbf16>
    %c0_11 = arith.constant 0 : index
    %c0_12 = arith.constant 0 : index
    %15 = vector.load %arg6[%c0_11, %c0_12] : memref<8x8xbf16, #tpu.memory_space<vmem>>, vector<8x8xbf16>
    %cst_13 = arith.constant 0.000000e+00 : bf16
    %16 = vector.broadcast %cst_13 : bf16 to vector<8x8xbf16>
    %17 = arith.cmpf one, %15, %16 : vector<8x8xbf16>
    %18 = vector.extract_strided_slice %8 {offsets = [0, 0], sizes = [8, 8], strides = [1, 1]} : vector<8x32xbf16> to vector<8x8xbf16>
    %19 = vector.extract_strided_slice %11 {offsets = [0, 0], sizes = [8, 8], strides = [1, 1]} : vector<8x32xbf16> to vector<8x8xbf16>
    %cst_14 = arith.constant dense<0.000000e+00> : vector<8x8xf32>
    %20 = tpu.matmul %18, %19, %cst_14 {dimension_numbers = #tpu.dot_dimension_numbers<[1], [1], [0], [0], [0, 0, 1, 0], [], []>} : vector<8x8xbf16>, vector<8x8xbf16>, vector<8x8xf32> -> vector<8x8xf32>
    %cst_15 = arith.constant -1.000000e+09 : f32
    %21 = vector.broadcast %cst_15 : f32 to vector<8x8xf32>
    %22 = arith.select %17, %20, %21 : vector<8x8xi1>, vector<8x8xf32>
    %cst_16 = arith.constant dense<0xFF800000> : vector<8xf32>
    %23 = vector.multi_reduction <maximumf>, %22, %cst_16 [1] : vector<8x8xf32> to vector<8xf32>
    %24 = vector.shape_cast %23 : vector<8xf32> to vector<8x1xf32>
    %25 = vector.broadcast %24 : vector<8x1xf32> to vector<8x8xf32>
    %26 = arith.subf %22, %25 : vector<8x8xf32>
    %27 = math.exp %26 : vector<8x8xf32>
    %cst_17 = arith.constant dense<0.000000e+00> : vector<8xf32>
    %28 = vector.multi_reduction <add>, %27, %cst_17 [1] : vector<8x8xf32> to vector<8xf32>
    %29 = vector.shape_cast %28 : vector<8xf32> to vector<8x1xf32>
    %30 = tpu.reciprocal %29 {approx = true} : vector<8x1xf32> -> vector<8x1xf32>
    %31 = vector.broadcast %30 : vector<8x1xf32> to vector<8x8xf32>
    %32 = arith.mulf %27, %31 : vector<8x8xf32>
    %33 = arith.truncf %32 : vector<8x8xf32> to vector<8x8xbf16>
    %34 = vector.extract_strided_slice %14 {offsets = [0, 0], sizes = [8, 8], strides = [1, 1]} : vector<8x32xbf16> to vector<8x8xbf16>
    %cst_18 = arith.constant dense<0.000000e+00> : vector<8x8xf32>
    %35 = tpu.matmul %33, %34, %cst_18 {dimension_numbers = #tpu.dot_dimension_numbers<[1], [0], [0], [1], [0, 0, 1, 1], [], []>} : vector<8x8xbf16>, vector<8x8xbf16>, vector<8x8xf32> -> vector<8x8xf32>
    %36 = arith.truncf %35 : vector<8x8xf32> to vector<8x8xbf16>
    %37 = vector.extract_strided_slice %8 {offsets = [0, 8], sizes = [8, 8], strides = [1, 1]} : vector<8x32xbf16> to vector<8x8xbf16>
    %38 = vector.extract_strided_slice %11 {offsets = [0, 8], sizes = [8, 8], strides = [1, 1]} : vector<8x32xbf16> to vector<8x8xbf16>
    %cst_19 = arith.constant dense<0.000000e+00> : vector<8x8xf32>
    %39 = tpu.matmul %37, %38, %cst_19 {dimension_numbers = #tpu.dot_dimension_numbers<[1], [1], [0], [0], [0, 0, 1, 0], [], []>} : vector<8x8xbf16>, vector<8x8xbf16>, vector<8x8xf32> -> vector<8x8xf32>
    %cst_20 = arith.constant -1.000000e+09 : f32
    %40 = vector.broadcast %cst_20 : f32 to vector<8x8xf32>
    %41 = arith.select %17, %39, %40 : vector<8x8xi1>, vector<8x8xf32>
    %cst_21 = arith.constant dense<0xFF800000> : vector<8xf32>
    %42 = vector.multi_reduction <maximumf>, %41, %cst_21 [1] : vector<8x8xf32> to vector<8xf32>
    %43 = vector.shape_cast %42 : vector<8xf32> to vector<8x1xf32>
    %44 = vector.broadcast %43 : vector<8x1xf32> to vector<8x8xf32>
    %45 = arith.subf %41, %44 : vector<8x8xf32>
    %46 = math.exp %45 : vector<8x8xf32>
    %cst_22 = arith.constant dense<0.000000e+00> : vector<8xf32>
    %47 = vector.multi_reduction <add>, %46, %cst_22 [1] : vector<8x8xf32> to vector<8xf32>
    %48 = vector.shape_cast %47 : vector<8xf32> to vector<8x1xf32>
    %49 = tpu.reciprocal %48 {approx = true} : vector<8x1xf32> -> vector<8x1xf32>
    %50 = vector.broadcast %49 : vector<8x1xf32> to vector<8x8xf32>
    %51 = arith.mulf %46, %50 : vector<8x8xf32>
    %52 = arith.truncf %51 : vector<8x8xf32> to vector<8x8xbf16>
    %53 = vector.extract_strided_slice %14 {offsets = [0, 8], sizes = [8, 8], strides = [1, 1]} : vector<8x32xbf16> to vector<8x8xbf16>
    %cst_23 = arith.constant dense<0.000000e+00> : vector<8x8xf32>
    %54 = tpu.matmul %52, %53, %cst_23 {dimension_numbers = #tpu.dot_dimension_numbers<[1], [0], [0], [1], [0, 0, 1, 1], [], []>} : vector<8x8xbf16>, vector<8x8xbf16>, vector<8x8xf32> -> vector<8x8xf32>
    %55 = arith.truncf %54 : vector<8x8xf32> to vector<8x8xbf16>
    %56 = vector.extract_strided_slice %8 {offsets = [0, 16], sizes = [8, 8], strides = [1, 1]} : vector<8x32xbf16> to vector<8x8xbf16>
    %57 = vector.extract_strided_slice %11 {offsets = [0, 16], sizes = [8, 8], strides = [1, 1]} : vector<8x32xbf16> to vector<8x8xbf16>
    %cst_24 = arith.constant dense<0.000000e+00> : vector<8x8xf32>
    %58 = tpu.matmul %56, %57, %cst_24 {dimension_numbers = #tpu.dot_dimension_numbers<[1], [1], [0], [0], [0, 0, 1, 0], [], []>} : vector<8x8xbf16>, vector<8x8xbf16>, vector<8x8xf32> -> vector<8x8xf32>
    %cst_25 = arith.constant -1.000000e+09 : f32
    %59 = vector.broadcast %cst_25 : f32 to vector<8x8xf32>
    %60 = arith.select %17, %58, %59 : vector<8x8xi1>, vector<8x8xf32>
    %cst_26 = arith.constant dense<0xFF800000> : vector<8xf32>
    %61 = vector.multi_reduction <maximumf>, %60, %cst_26 [1] : vector<8x8xf32> to vector<8xf32>
    %62 = vector.shape_cast %61 : vector<8xf32> to vector<8x1xf32>
    %63 = vector.broadcast %62 : vector<8x1xf32> to vector<8x8xf32>
    %64 = arith.subf %60, %63 : vector<8x8xf32>
    %65 = math.exp %64 : vector<8x8xf32>
    %cst_27 = arith.constant dense<0.000000e+00> : vector<8xf32>
    %66 = vector.multi_reduction <add>, %65, %cst_27 [1] : vector<8x8xf32> to vector<8xf32>
    %67 = vector.shape_cast %66 : vector<8xf32> to vector<8x1xf32>
    %68 = tpu.reciprocal %67 {approx = true} : vector<8x1xf32> -> vector<8x1xf32>
    %69 = vector.broadcast %68 : vector<8x1xf32> to vector<8x8xf32>
    %70 = arith.mulf %65, %69 : vector<8x8xf32>
    %71 = arith.truncf %70 : vector<8x8xf32> to vector<8x8xbf16>
    %72 = vector.extract_strided_slice %14 {offsets = [0, 16], sizes = [8, 8], strides = [1, 1]} : vector<8x32xbf16> to vector<8x8xbf16>
    %cst_28 = arith.constant dense<0.000000e+00> : vector<8x8xf32>
    %73 = tpu.matmul %71, %72, %cst_28 {dimension_numbers = #tpu.dot_dimension_numbers<[1], [0], [0], [1], [0, 0, 1, 1], [], []>} : vector<8x8xbf16>, vector<8x8xbf16>, vector<8x8xf32> -> vector<8x8xf32>
    %74 = arith.truncf %73 : vector<8x8xf32> to vector<8x8xbf16>
    %75 = vector.extract_strided_slice %8 {offsets = [0, 24], sizes = [8, 8], strides = [1, 1]} : vector<8x32xbf16> to vector<8x8xbf16>
    %76 = vector.extract_strided_slice %11 {offsets = [0, 24], sizes = [8, 8], strides = [1, 1]} : vector<8x32xbf16> to vector<8x8xbf16>
    %cst_29 = arith.constant dense<0.000000e+00> : vector<8x8xf32>
    %77 = tpu.matmul %75, %76, %cst_29 {dimension_numbers = #tpu.dot_dimension_numbers<[1], [1], [0], [0], [0, 0, 1, 0], [], []>} : vector<8x8xbf16>, vector<8x8xbf16>, vector<8x8xf32> -> vector<8x8xf32>
    %cst_30 = arith.constant -1.000000e+09 : f32
    %78 = vector.broadcast %cst_30 : f32 to vector<8x8xf32>
    %79 = arith.select %17, %77, %78 : vector<8x8xi1>, vector<8x8xf32>
    %cst_31 = arith.constant dense<0xFF800000> : vector<8xf32>
    %80 = vector.multi_reduction <maximumf>, %79, %cst_31 [1] : vector<8x8xf32> to vector<8xf32>
    %81 = vector.shape_cast %80 : vector<8xf32> to vector<8x1xf32>
    %82 = vector.broadcast %81 : vector<8x1xf32> to vector<8x8xf32>
    %83 = arith.subf %79, %82 : vector<8x8xf32>
    %84 = math.exp %83 : vector<8x8xf32>
    %cst_32 = arith.constant dense<0.000000e+00> : vector<8xf32>
    %85 = vector.multi_reduction <add>, %84, %cst_32 [1] : vector<8x8xf32> to vector<8xf32>
    %86 = vector.shape_cast %85 : vector<8xf32> to vector<8x1xf32>
    %87 = tpu.reciprocal %86 {approx = true} : vector<8x1xf32> -> vector<8x1xf32>
    %88 = vector.broadcast %87 : vector<8x1xf32> to vector<8x8xf32>
    %89 = arith.mulf %84, %88 : vector<8x8xf32>
    %90 = arith.truncf %89 : vector<8x8xf32> to vector<8x8xbf16>
    %91 = vector.extract_strided_slice %14 {offsets = [0, 24], sizes = [8, 8], strides = [1, 1]} : vector<8x32xbf16> to vector<8x8xbf16>
    %cst_33 = arith.constant dense<0.000000e+00> : vector<8x8xf32>
    %92 = tpu.matmul %90, %91, %cst_33 {dimension_numbers = #tpu.dot_dimension_numbers<[1], [0], [0], [1], [0, 0, 1, 1], [], []>} : vector<8x8xbf16>, vector<8x8xbf16>, vector<8x8xf32> -> vector<8x8xf32>
    %93 = arith.truncf %92 : vector<8x8xf32> to vector<8x8xbf16>
    %94 = tpu.concatenate %36, %55, %74, %93 in 1 : vector<8x8xbf16>, vector<8x8xbf16>, vector<8x8xbf16>, vector<8x8xbf16> -> vector<8x32xbf16>
    %c0_34 = arith.constant 0 : index
    %c0_35 = arith.constant 0 : index
    %c0_36 = arith.constant 0 : index
    %95 = vector.load %arg8[%c0_34, %c0_35, %c0_36] : memref<1x32x32xbf16, #tpu.memory_space<vmem>>, vector<1x32x32xbf16>
    %96 = vector.shape_cast %95 : vector<1x32x32xbf16> to vector<32x32xbf16>
    %cst_37 = arith.constant dense<0.000000e+00> : vector<8x32xf32>
    %97 = tpu.matmul %94, %96, %cst_37 {dimension_numbers = #tpu.dot_dimension_numbers<[1], [0], [0], [1], [0, 0, 1, 1], [], []>} : vector<8x32xbf16>, vector<32x32xbf16>, vector<8x32xf32> -> vector<8x32xf32>
    %c0_i32_38 = arith.constant 0 : i32
    %98 = arith.cmpi eq, %arg2, %c0_i32_38 : i32
    %99 = arith.extui %98 : i1 to i32
    %c0_i32_39 = arith.constant 0 : i32
    %100 = arith.cmpi ne, %99, %c0_i32_39 : i32
    scf.if %100 {
      %c0_42 = arith.constant 0 : index
      %c0_43 = arith.constant 0 : index
      %c0_44 = arith.constant 0 : index
      %104 = vector.load %arg9[%c0_42, %c0_43, %c0_44] : memref<1x8x32xf32, #tpu.memory_space<vmem>>, vector<1x8x32xf32>
      %105 = vector.shape_cast %104 : vector<1x8x32xf32> to vector<8x32xf32>
      %106 = vector.shape_cast %97 : vector<8x32xf32> to vector<1x8x32xf32>
      tpu.vector_store %arg9[%c0_42, %c0_43, %c0_44], %106 {strides = array<i32>} : memref<1x8x32xf32, #tpu.memory_space<vmem>>, vector<1x8x32xf32>,
    } else {
    }
    %c0_i32_40 = arith.constant 0 : i32
    %101 = arith.cmpi ne, %arg2, %c0_i32_40 : i32
    %102 = arith.extui %101 : i1 to i32
    %c0_i32_41 = arith.constant 0 : i32
    %103 = arith.cmpi ne, %102, %c0_i32_41 : i32
    scf.if %103 {
      %c0_42 = arith.constant 0 : index
      %c0_43 = arith.constant 0 : index
      %c0_44 = arith.constant 0 : index
      %104 = vector.load %arg9[%c0_42, %c0_43, %c0_44] : memref<1x8x32xf32, #tpu.memory_space<vmem>>, vector<1x8x32xf32>
      %105 = vector.shape_cast %104 : vector<1x8x32xf32> to vector<8x32xf32>
      %106 = arith.addf %105, %97 : vector<8x32xf32>
      %c0_45 = arith.constant 0 : index
      %c0_46 = arith.constant 0 : index
      %c0_47 = arith.constant 0 : index
      %107 = vector.load %arg9[%c0_45, %c0_46, %c0_47] : memref<1x8x32xf32, #tpu.memory_space<vmem>>, vector<1x8x32xf32>
      %108 = vector.shape_cast %107 : vector<1x8x32xf32> to vector<8x32xf32>
      %109 = vector.shape_cast %106 : vector<8x32xf32> to vector<1x8x32xf32>
      tpu.vector_store %arg9[%c0_45, %c0_46, %c0_47], %109 {strides = array<i32>} : memref<1x8x32xf32, #tpu.memory_space<vmem>>, vector<1x8x32xf32>,
    } else {
    }
    return
  }
  func.func @transform_0(%arg0: i32, %arg1: i32, %arg2: i32) -> (i32, i32, i32) {
    %c0_i32 = arith.constant 0 : i32
    %c0_i32_0 = arith.constant 0 : i32
    return %arg0, %arg1, %c0_i32 : i32, i32, i32
  }
  func.func @transform_1(%arg0: i32, %arg1: i32, %arg2: i32) -> (i32, i32, i32) {
    %c0_i32 = arith.constant 0 : i32
    %c0_i32_0 = arith.constant 0 : i32
    %c0_i32_1 = arith.constant 0 : i32
    return %arg0, %c0_i32, %c0_i32_0 : i32, i32, i32
  }
  func.func @transform_2(%arg0: i32, %arg1: i32, %arg2: i32) -> (i32, i32, i32) {
    %c0_i32 = arith.constant 0 : i32
    %c0_i32_0 = arith.constant 0 : i32
    %c0_i32_1 = arith.constant 0 : i32
    return %arg0, %c0_i32, %c0_i32_0 : i32, i32, i32
  }
  func.func @transform_3(%arg0: i32, %arg1: i32, %arg2: i32) -> (i32, i32) {
    %c0_i32 = arith.constant 0 : i32
    %c0_i32_0 = arith.constant 0 : i32
    return %arg1, %c0_i32 : i32, i32
  }
  func.func @transform_4(%arg0: i32, %arg1: i32, %arg2: i32) -> (i32, i32, i32, i32) {
    %c0_i32 = arith.constant 0 : i32
    %c0_i32_0 = arith.constant 0 : i32
    %c0_i32_1 = arith.constant 0 : i32
    %c0_i32_2 = arith.constant 0 : i32
    return %c0_i32, %arg2, %c0_i32_0, %c0_i32_1 : i32, i32, i32, i32
  }
  func.func @transform_5(%arg0: i32, %arg1: i32, %arg2: i32) -> (i32, i32, i32) {
    %c0_i32 = arith.constant 0 : i32
    %c0_i32_0 = arith.constant 0 : i32
    %c0_i32_1 = arith.constant 0 : i32
    return %arg2, %c0_i32, %c0_i32_0 : i32, i32, i32
  }
  func.func @transform_6(%arg0: i32, %arg1: i32, %arg2: i32) -> (i32, i32, i32) {
    %c0_i32 = arith.constant 0 : i32
    %c0_i32_0 = arith.constant 0 : i32
    return %arg0, %arg1, %c0_i32 : i32, i32, i32
  }
}

</mosaic_0001>

<llo_original>
// kernel: tpu_custom_call.1
$region0: #{tpu_custom_call.1}
  #allocation0 [shape = 'u32[]', space=smem, size = 0x4, offset = 0x4, fixed_abs, tag = 'smem constant byte address 0x4 - core index']
  #allocation1 [shape = 'u32[144,128]{1,0:T(1,128)}', space=vmem, size = 0x12000, scoped, tag = 'internal scratch']
  #allocation2 [shape = 'bf16[1,8,32]{2,1,0:T(8,128)(2,1)}', space=vmem, size = 0x800, scoped, tag = 'scratch operand']
  #allocation3 [shape = 'bf16[1,8,32]{2,1,0:T(8,128)(2,1)}', space=vmem, size = 0x800, scoped, tag = 'scratch operand']
  %s0 = inlined_call_operand.hbm [shape: bf16[2,8,32], index: 0, kind: input, shape index: {}]
  %s1 = inlined_call_operand.hbm [shape: bf16[2,8,32], index: 1, kind: input, shape index: {}]
  %s2 = inlined_call_operand.hbm [shape: bf16[2,8,32], index: 2, kind: input, shape index: {}]
  %s3 = inlined_call_operand.hbm [shape: bf16[8,8], index: 3, kind: input, shape index: {}]
  %s4 = inlined_call_operand.hbm [shape: bf16[3,1,32,32], index: 4, kind: input, shape index: {}]
  %s5 = inlined_call_operand.vmem [shape: bf16[1,32,32], index: 5, kind: input, shape index: {}]
  %s6 = inlined_call_operand.hbm [shape: f32[2,8,32], index: 6, kind: output, shape index: {}]
  %s7 = sld [smem:[#allocation0]]
  $region89: #{tpu_custom_call.1} parent=0
    _
  %s9 = ssub.s32 1, %s7
  %s10 = scalar_select 0, %s9, %s7
  $region1: #{tpu_custom_call.1} parent=0
    #allocation4 [shape = 'u8[4096]{0}', space=vmem, size = 0x1000, scoped, tag = 'input window, operand 0']
    #allocation5 [shape = 's32[2]{0}', space=sflag, size = 0x8, scoped, tag = 'scoped memory for tpu_custom_call.1']
    #allocation6 [shape = 's32[2]{0}', space=sflag, size = 0x8, scoped, tag = 'scoped memory for tpu_custom_call.1']
    #allocation7 [shape = 'u8[4096]{0}', space=vmem, size = 0x1000, scoped, tag = 'input window, operand 1']
    #allocation8 [shape = 's32[2]{0}', space=sflag, size = 0x8, scoped, tag = 'scoped memory for tpu_custom_call.1']
    #allocation9 [shape = 'u8[4096]{0}', space=vmem, size = 0x1000, scoped, tag = 'input window, operand 2']
    #allocation10 [shape = 'u8[2048]{0}', space=vmem, size = 0x800, scoped, tag = 'input window, operand 3, single buffered']
    #allocation11 [shape = 's32[1]{0}', space=sflag, size = 0x4, scoped, tag = 'scoped memory for tpu_custom_call.1']
    #allocation12 [shape = 'u8[24576]{0}', space=vmem, size = 0x6000, scoped, tag = 'input window, operand 4, single buffered']
    #allocation13 [shape = 'u8[8192]{0}', space=vmem, size = 0x2000, scoped, tag = 'output window, operand 0']
    %11 = vsyncpa [#allocation5], 0
    %s12 = scalar_lea.sflag [#allocation5], 1
    %13 = vsyncpa %s12, 0
    %14 = vsyncpa [#allocation8], 0
    %s15 = scalar_lea.sflag [#allocation8], 1
    %16 = vsyncpa %s15, 0
    %17 = vsyncpa [#allocation11], 0
    %18 = vsyncpa [#allocation6], 0
    %s19 = scalar_lea.sflag [#allocation6], 1
    %20 = vsyncpa %s19, 0
    loop: start=0, step=1, limit=4
    $region2: #{tpu_custom_call.1} parent=1 // loop_pre_header
      _
    $region3: #{tpu_custom_call.1} parent=1 // loop_header
      %s22 = sphi 0, %s26
      %p23 = scmp.ge.s32.totalorder %s22, 4
      %s29 = sphi 0, %s48
      %s30 = sphi 0, %s44
      %s31 = sphi 0, %s40
      %s32 = sphi 0, %s29
      %s33 = sphi 0, %s30
      %s34 = sphi 0, %s31
      %s35 = sphi 0, %s32
      %s36 = sphi 0, %s33
      %s37 = sphi 0, %s34
      %s53 = sphi 0, %s55
      %s56 = sphi 0, %s53
      %s57 = sphi 0, %s56
      %s73 = sphi 0, %s57
      %s79 = sphi 0, %s81
      %s82 = sphi 0, %s79
      %s83 = sphi 0, %s82
      %s99 = sphi 0, %s83
      %s105 = sphi 0, %s107
      %s108 = sphi 0, %s105
      %s109 = sphi 0, %s108
      %s125 = sphi 0, %s109
      %s131 = sphi 0, %s133
      %s134 = sphi 0, %s131
      %s135 = sphi 0, %s134
      %s151 = sphi 0, %s135
      %s157 = sphi 0, %s159
      %s160 = sphi 0, %s157
      %s161 = sphi 0, %s160
      %s177 = sphi 0, %s161
      %s183 = sphi 0, %s185
      %s186 = sphi 0, %s183
      %s187 = sphi 0, %s186
      %s203 = sphi 0, %s187
      %s211 = sphi 0, %s213
      %s214 = sphi 0, %s211
      %s215 = sphi 0, %s214
      %s231 = sphi 0, %s215
    $region4: #{tpu_custom_call.1} parent=1 // loop_header_branch
      %25 = sbr.rel (%p23) target = $region8
    $region5: #{tpu_custom_call.1} parent=1 // loop_body
      %s27 = ssub.s32 %s22, 1
      %s28 = ssub.s32 %s22, 2
      %s38 = sadd.s32 1, %s31
      %p39 = scmp.ge.s32.totalorder %s38, 1
      %s40 = scalar_select %p39, 0, %s38
      %s41 = sadd.s32 1, %s30
      %s42 = scalar_select %p39, %s41, %s30
      %p43 = scmp.ge.s32.totalorder %s42, 1
      %s44 = scalar_select %p43, 0, %s42
      %s45 = sadd.s32 1, %s29
      %s46 = scalar_select %p43, %s45, %s29
      %p47 = scmp.ge.s32.totalorder %s46, 2
      %s48 = scalar_select %p47, 0, %s46
      %s49 = ssub.s32 %s29, %s48
      %s50 = ssub.s32 %s30, %s44
      %s51 = sor.u32 %s49, %s50
      %p52 = scmp.eq.s32.totalorder %s51, 0
      %s54 = sadd.s32 %s53, 1
      %s55 = scalar_select %p52, %s53, %s54
      %p58 = pneg %p52
      %p59 = scmp.eq.s32.totalorder %s22, 1
      %p60 = por %p58, %p59
      %p61 = scmp.ne.s32.totalorder %s53, %s56
      %p62 = scmp.eq.s32.totalorder %s22, 0
      %p63 = por %p61, %p62
      %p64 = scmp.ne.s32.totalorder %s53, %s56
      %p65 = scmp.eq.s32.totalorder %s27, 1
      %p66 = por %p64, %p65
      %p67 = scmp.ne.s32.totalorder %s56, %s57
      %p68 = scmp.eq.s32.totalorder %s27, 0
      %p69 = por %p67, %p68
      %p70 = scmp.ne.s32.totalorder %s56, %s57
      %p71 = scmp.eq.s32.totalorder %s28, 1
      %p72 = por %p70, %p71
      %p74 = scmp.ne.s32.totalorder %s57, %s73
      %p75 = scmp.eq.s32.totalorder %s28, 0
      %p76 = por %p74, %p75
      %s77 = ssub.s32 %s29, %s48
      %p78 = scmp.eq.s32.totalorder %s77, 0
      %s80 = sadd.s32 %s79, 1
      %s81 = scalar_select %p78, %s79, %s80
      %p84 = pneg %p78
      %p85 = scmp.eq.s32.totalorder %s22, 1
      %p86 = por %p84, %p85
      %p87 = scmp.ne.s32.totalorder %s79, %s82
      %p88 = scmp.eq.s32.totalorder %s22, 0
      %p89 = por %p87, %p88
      %p90 = scmp.ne.s32.totalorder %s79, %s82
      %p91 = scmp.eq.s32.totalorder %s27, 1
      %p92 = por %p90, %p91
      %p93 = scmp.ne.s32.totalorder %s82, %s83
      %p94 = scmp.eq.s32.totalorder %s27, 0
      %p95 = por %p93, %p94
      %p96 = scmp.ne.s32.totalorder %s82, %s83
      %p97 = scmp.eq.s32.totalorder %s28, 1
      %p98 = por %p96, %p97
      %p100 = scmp.ne.s32.totalorder %s83, %s99
      %p101 = scmp.eq.s32.totalorder %s28, 0
      %p102 = por %p100, %p101
      %s103 = ssub.s32 %s29, %s48
      %p104 = scmp.eq.s32.totalorder %s103, 0
      %s106 = sadd.s32 %s105, 1
      %s107 = scalar_select %p104, %s105, %s106
      %p110 = pneg %p104
      %p111 = scmp.eq.s32.totalorder %s22, 1
      %p112 = por %p110, %p111
      %p113 = scmp.ne.s32.totalorder %s105, %s108
      %p114 = scmp.eq.s32.totalorder %s22, 0
      %p115 = por %p113, %p114
      %p116 = scmp.ne.s32.totalorder %s105, %s108
      %p117 = scmp.eq.s32.totalorder %s27, 1
      %p118 = por %p116, %p117
      %p119 = scmp.ne.s32.totalorder %s108, %s109
      %p120 = scmp.eq.s32.totalorder %s27, 0
      %p121 = por %p119, %p120
      %p122 = scmp.ne.s32.totalorder %s108, %s109
      %p123 = scmp.eq.s32.totalorder %s28, 1
      %p124 = por %p122, %p123
      %p126 = scmp.ne.s32.totalorder %s109, %s125
      %p127 = scmp.eq.s32.totalorder %s28, 0
      %p128 = por %p126, %p127
      %s129 = ssub.s32 %s30, %s44
      %p130 = scmp.eq.s32.totalorder %s129, 0
      %s132 = sadd.s32 %s131, 1
      %s133 = scalar_select %p130, %s131, %s132
      %p136 = pneg %p130
      %p137 = scmp.eq.s32.totalorder %s22, 1
      %p138 = por %p136, %p137
      %p139 = scmp.ne.s32.totalorder %s131, %s134
      %p140 = scmp.eq.s32.totalorder %s22, 0
      %p141 = por %p139, %p140
      %p142 = scmp.ne.s32.totalorder %s131, %s134
      %p143 = scmp.eq.s32.totalorder %s27, 1
      %p144 = por %p142, %p143
      %p145 = scmp.ne.s32.totalorder %s134, %s135
      %p146 = scmp.eq.s32.totalorder %s27, 0
      %p147 = por %p145, %p146
      %p148 = scmp.ne.s32.totalorder %s134, %s135
      %p149 = scmp.eq.s32.totalorder %s28, 1
      %p150 = por %p148, %p149
      %p152 = scmp.ne.s32.totalorder %s135, %s151
      %p153 = scmp.eq.s32.totalorder %s28, 0
      %p154 = por %p152, %p153
      %s155 = ssub.s32 %s31, %s40
      %p156 = scmp.eq.s32.totalorder %s155, 0
      %s158 = sadd.s32 %s157, 1
      %s159 = scalar_select %p156, %s157, %s158
      %p162 = pneg %p156
      %p163 = scmp.eq.s32.totalorder %s22, 1
      %p164 = por %p162, %p163
      %p165 = scmp.ne.s32.totalorder %s157, %s160
      %p166 = scmp.eq.s32.totalorder %s22, 0
      %p167 = por %p165, %p166
      %p168 = scmp.ne.s32.totalorder %s157, %s160
      %p169 = scmp.eq.s32.totalorder %s27, 1
      %p170 = por %p168, %p169
      %p171 = scmp.ne.s32.totalorder %s160, %s161
      %p172 = scmp.eq.s32.totalorder %s27, 0
      %p173 = por %p171, %p172
      %p174 = scmp.ne.s32.totalorder %s160, %s161
      %p175 = scmp.eq.s32.totalorder %s28, 1
      %p176 = por %p174, %p175
      %p178 = scmp.ne.s32.totalorder %s161, %s177
      %p179 = scmp.eq.s32.totalorder %s28, 0
      %p180 = por %p178, %p179
      %s181 = ssub.s32 %s31, %s40
      %p182 = scmp.eq.s32.totalorder %s181, 0
      %s184 = sadd.s32 %s183, 1
      %s185 = scalar_select %p182, %s183, %s184
      %p188 = pneg %p182
      %p189 = scmp.eq.s32.totalorder %s22, 1
      %p190 = por %p188, %p189
      %p191 = scmp.ne.s32.totalorder %s183, %s186
      %p192 = scmp.eq.s32.totalorder %s22, 0
      %p193 = por %p191, %p192
      %p194 = scmp.ne.s32.totalorder %s183, %s186
      %p195 = scmp.eq.s32.totalorder %s27, 1
      %p196 = por %p194, %p195
      %p197 = scmp.ne.s32.totalorder %s186, %s187
      %p198 = scmp.eq.s32.totalorder %s27, 0
      %p199 = por %p197, %p198
      %p200 = scmp.ne.s32.totalorder %s186, %s187
      %p201 = scmp.eq.s32.totalorder %s28, 1
      %p202 = por %p200, %p201
      %p204 = scmp.ne.s32.totalorder %s187, %s203
      %p205 = scmp.eq.s32.totalorder %s28, 0
      %p206 = por %p204, %p205
      %s207 = ssub.s32 %s29, %s48
      %s208 = ssub.s32 %s30, %s44
      %s209 = sor.u32 %s207, %s208
      %p210 = scmp.eq.s32.totalorder %s209, 0
      %s212 = sadd.s32 %s211, 1
      %s213 = scalar_select %p210, %s211, %s212
      %p216 = pneg %p210
      %p217 = scmp.eq.s32.totalorder %s22, 1
      %p218 = por %p216, %p217
      %p219 = scmp.ne.s32.totalorder %s211, %s214
      %p220 = scmp.eq.s32.totalorder %s22, 0
      %p221 = por %p219, %p220
      %p222 = scmp.ne.s32.totalorder %s211, %s214
      %p223 = scmp.eq.s32.totalorder %s27, 1
      %p224 = por %p222, %p223
      %p225 = scmp.ne.s32.totalorder %s214, %s215
      %p226 = scmp.eq.s32.totalorder %s27, 0
      %p227 = por %p225, %p226
      %p228 = scmp.ne.s32.totalorder %s214, %s215
      %p229 = scmp.eq.s32.totalorder %s28, 1
      %p230 = por %p228, %p229
      %p232 = scmp.ne.s32.totalorder %s215, %s231
      %p233 = scmp.eq.s32.totalorder %s28, 0
      %p234 = por %p232, %p233
      %p235 = scmp.le.s32.totalorder 1, %s22
      %p236 = scmp.lt.s32.totalorder %s22, 3
      %p237 = pnand %p235, %p236
      %p238 = pneg %p237
      // Predicated region
      $region9: #{tpu_custom_call.1} parent=5 // pred_check
        _
      $region10: #{tpu_custom_call.1} parent=5 // pred_check_branch
        %240 = sbr.rel (%p237) target = $region12
      $region11: #{tpu_custom_call.1} parent=5 // pred_region
        %s241 = ssub.s32 %s22, 1
        // Predicated region
        $region13: #{tpu_custom_call.1} parent=11 // pred_check
          %p242 = pneg %p147
        $region14: #{tpu_custom_call.1} parent=11 // pred_check_branch
          %244 = sbr.rel (%p242) target = $region16
        $region15: #{tpu_custom_call.1} parent=11 // pred_region
          %s246 = ssub.s32 64, 64
          %247 = vsyncadd [#allocation11], %s246
          %s248 = smul.addr %s33, 64
          %s249 = scalar_lea.hbm %s3, %s248
          %s251 = sshll.u32 [#allocation10], 4
          %s252 = int_to_ptr.vmem [resolvable:$true] %s251
          %254 = dma.hbm_to_vmem [thread:$0]  %s249, 64, %s252, [#allocation11]
        $region16: #{tpu_custom_call.1} parent=11 // pred_fallthru
          _
        // Predicated region
        $region17: #{tpu_custom_call.1} parent=11 // pred_check
          %p255 = pneg %p173
        $region18: #{tpu_custom_call.1} parent=11 // pred_check_branch
          %257 = sbr.rel (%p255) target = $region20
        $region19: #{tpu_custom_call.1} parent=11 // pred_region
          %s259 = ssub.s32 768, 768
          %260 = vsyncadd [#allocation11], %s259
          %s261 = smul.addr %s34, 4
          %s262 = smul.addr %s261, 64
          %s263 = scalar_lea.hbm %s4, %s262
          %s264 = sshll.u32 [#allocation12], 4
          %s265 = int_to_ptr.vmem [resolvable:$true] %s264
          %270 = dma.hbm_to_vmem [thread:$0]  %s263, 768, %s265, [#allocation11], 64, 64, 4
        $region20: #{tpu_custom_call.1} parent=11 // pred_fallthru
          _
        // Predicated region
        $region21: #{tpu_custom_call.1} parent=11 // pred_check
          %p271 = pneg %p199
        $region22: #{tpu_custom_call.1} parent=11 // pred_check_branch
          %273 = sbr.rel (%p271) target = $region24
        $region23: #{tpu_custom_call.1} parent=11 // pred_region
          %p274 = scmp.lt.s32.totalorder %s34, 0
          %s275 = scalar_select %p274, %s34, 0
          %s276 = smul.addr %s275, 4
          %s277 = smul.addr %s276, 4
          %s278 = scalar_lea.vmem %s5, %s277
        $region24: #{tpu_custom_call.1} parent=11 // pred_fallthru
          _
      $region12: #{tpu_custom_call.1} parent=5 // pred_fallthru
        _
      %p279 = scmp.lt.s32.totalorder %s22, 2
      // Predicated region
      $region25: #{tpu_custom_call.1} parent=5 // pred_check
        %p280 = pneg %p279
      $region26: #{tpu_custom_call.1} parent=5 // pred_check_branch
        %282 = sbr.rel (%p280) target = $region28
      $region27: #{tpu_custom_call.1} parent=5 // pred_region
        // Predicated region
        $region29: #{tpu_custom_call.1} parent=27 // pred_check
          %p283 = pneg %p63
        $region30: #{tpu_custom_call.1} parent=27 // pred_check_branch
          %285 = sbr.rel (%p283) target = $region32
        $region31: #{tpu_custom_call.1} parent=27 // pred_region
          %s286 = sand.u32 %s53, 1
          %s287 = scalar_lea.sflag [#allocation5], %s286
          %s288 = sand.u32 %s53, 1
          %s289 = smul.addr %s288, 4
          %s290 = scalar_lea.vmem [#allocation4], %s289
          %s292 = ssub.s32 64, 64
          %293 = vsyncadd %s287, %s292
          %s294 = sadd.s32 %s30, %s29
          %s295 = smul.addr %s294, 64
          %s296 = scalar_lea.hbm %s0, %s295
          %s298 = sshll.u32 %s290, 4
          %s299 = int_to_ptr.vmem [resolvable:$true] %s298
          %301 = dma.hbm_to_vmem [thread:$0]  %s296, 64, %s299, %s287
        $region32: #{tpu_custom_call.1} parent=27 // pred_fallthru
          _
        // Predicated region
        $region33: #{tpu_custom_call.1} parent=27 // pred_check
          %p302 = pneg %p89
        $region34: #{tpu_custom_call.1} parent=27 // pred_check_branch
          %304 = sbr.rel (%p302) target = $region36
        $region35: #{tpu_custom_call.1} parent=27 // pred_region
          %s305 = sand.u32 %s22, 1
          %s306 = scalar_lea.sflag [#allocation8], %s305
          %s307 = sand.u32 %s79, 1
          %s308 = smul.addr %s307, 4
          %s309 = scalar_lea.vmem [#allocation7], %s308
          %s311 = ssub.s32 64, 64
          %312 = vsyncadd %s306, %s311
          %s313 = smul.addr %s29, 64
          %s314 = scalar_lea.hbm %s1, %s313
          %s316 = sshll.u32 %s309, 4
          %s317 = int_to_ptr.vmem [resolvable:$true] %s316
          %319 = dma.hbm_to_vmem [thread:$0]  %s314, 64, %s317, %s306
        $region36: #{tpu_custom_call.1} parent=27 // pred_fallthru
          _
        // Predicated region
        $region37: #{tpu_custom_call.1} parent=27 // pred_check
          %p320 = pneg %p115
        $region38: #{tpu_custom_call.1} parent=27 // pred_check_branch
          %322 = sbr.rel (%p320) target = $region40
        $region39: #{tpu_custom_call.1} parent=27 // pred_region
          %s323 = sand.u32 %s22, 1
          %s324 = scalar_lea.sflag [#allocation8], %s323
          %s325 = sand.u32 %s105, 1
          %s326 = smul.addr %s325, 4
          %s327 = scalar_lea.vmem [#allocation9], %s326
          %s329 = ssub.s32 64, 64
          %330 = vsyncadd %s324, %s329
          %s331 = smul.addr %s29, 64
          %s332 = scalar_lea.hbm %s2, %s331
          %s334 = sshll.u32 %s327, 4
          %s335 = int_to_ptr.vmem [resolvable:$true] %s334
          %337 = dma.hbm_to_vmem [thread:$0]  %s332, 64, %s335, %s324
        $region40: #{tpu_custom_call.1} parent=27 // pred_fallthru
          _
      $region28: #{tpu_custom_call.1} parent=5 // pred_fallthru
        _
      %p338 = scmp.le.s32.totalorder 1, %s22
      %p339 = scmp.lt.s32.totalorder %s22, 3
      %p340 = pnand %p338, %p339
      %p341 = pneg %p340
      // Predicated region
      $region41: #{tpu_custom_call.1} parent=5 // pred_check
        _
      $region42: #{tpu_custom_call.1} parent=5 // pred_check_branch
        %343 = sbr.rel (%p340) target = $region44
      $region43: #{tpu_custom_call.1} parent=5 // pred_region
        %s344 = ssub.s32 %s22, 1
        %s345 = sand.u32 %s56, 1
        %s346 = scalar_lea.sflag [#allocation5], %s345
        %s347 = sand.u32 %s56, 1
        %s348 = smul.addr %s347, 4
        %s349 = scalar_lea.vmem [#allocation4], %s348
        // Predicated region
        $region45: #{tpu_custom_call.1} parent=43 // pred_check
          %p350 = pneg %p69
        $region46: #{tpu_custom_call.1} parent=43 // pred_check_branch
          %352 = sbr.rel (%p350) target = $region48
        $region47: #{tpu_custom_call.1} parent=43 // pred_region
          %353 = dma.done %s346, 64
        $region48: #{tpu_custom_call.1} parent=43 // pred_fallthru
          _
        %s354 = sand.u32 %s27, 1
        %s355 = scalar_lea.sflag [#allocation8], %s354
        %s356 = sand.u32 %s82, 1
        %s357 = smul.addr %s356, 4
        %s358 = scalar_lea.vmem [#allocation7], %s357
        // Predicated region
        $region49: #{tpu_custom_call.1} parent=43 // pred_check
          %p359 = pneg %p95
        $region50: #{tpu_custom_call.1} parent=43 // pred_check_branch
          %361 = sbr.rel (%p359) target = $region52
        $region51: #{tpu_custom_call.1} parent=43 // pred_region
          %362 = dma.done %s355, 64
        $region52: #{tpu_custom_call.1} parent=43 // pred_fallthru
          _
        %s363 = sand.u32 %s27, 1
        %s364 = scalar_lea.sflag [#allocation8], %s363
        %s365 = sand.u32 %s108, 1
        %s366 = smul.addr %s365, 4
        %s367 = scalar_lea.vmem [#allocation9], %s366
        // Predicated region
        $region53: #{tpu_custom_call.1} parent=43 // pred_check
          %p368 = pneg %p121
        $region54: #{tpu_custom_call.1} parent=43 // pred_check_branch
          %370 = sbr.rel (%p368) target = $region56
        $region55: #{tpu_custom_call.1} parent=43 // pred_region
          %371 = dma.done %s364, 64
        $region56: #{tpu_custom_call.1} parent=43 // pred_fallthru
          _
        // Predicated region
        $region57: #{tpu_custom_call.1} parent=43 // pred_check
          %p372 = pneg %p147
        $region58: #{tpu_custom_call.1} parent=43 // pred_check_branch
          %374 = sbr.rel (%p372) target = $region60
        $region59: #{tpu_custom_call.1} parent=43 // pred_region
          %375 = dma.done [#allocation11], 64
        $region60: #{tpu_custom_call.1} parent=43 // pred_fallthru
          _
        // Predicated region
        $region61: #{tpu_custom_call.1} parent=43 // pred_check
          %p376 = pneg %p173
        $region62: #{tpu_custom_call.1} parent=43 // pred_check_branch
          %378 = sbr.rel (%p376) target = $region64
        $region63: #{tpu_custom_call.1} parent=43 // pred_region
          %379 = dma.done [#allocation11], 768
        $region64: #{tpu_custom_call.1} parent=43 // pred_fallthru
          _
        %s380 = sand.u32 %s56, 1
        %s381 = scalar_lea.sflag [#allocation5], %s380
        %s382 = sand.u32 %s56, 1
        %s383 = smul.addr %s382, 4
        %s384 = scalar_lea.vmem [#allocation4], %s383
        %p385 = pneg %p69
        %p386 = pneg %p66
        %s387 = sand.u32 %s27, 1
        %s388 = scalar_lea.sflag [#allocation8], %s387
        %s389 = sand.u32 %s82, 1
        %s390 = smul.addr %s389, 4
        %s391 = scalar_lea.vmem [#allocation7], %s390
        %p392 = pneg %p95
        %p393 = pneg %p92
        %s394 = sand.u32 %s27, 1
        %s395 = scalar_lea.sflag [#allocation8], %s394
        %s396 = sand.u32 %s108, 1
        %s397 = smul.addr %s396, 4
        %s398 = scalar_lea.vmem [#allocation9], %s397
        %p399 = pneg %p121
        %p400 = pneg %p118
        %p401 = pneg %p147
        %p402 = pneg %p144
        %p403 = pneg %p173
        %p404 = pneg %p170
        %p405 = scmp.lt.s32.totalorder %s34, 0
        %s406 = scalar_select %p405, %s34, 0
        %s407 = smul.addr %s406, 4
        %s408 = smul.addr %s407, 4
        %s409 = scalar_lea.vmem %s5, %s408
        %p410 = pneg %p199
        %p411 = pneg %p196
        %p412 = pneg %p227
        %p413 = pneg %p224
        %s414 = sand.u32 %s214, 1
        %s415 = scalar_lea.sflag [#allocation6], %s414
        %s416 = sand.u32 %s214, 1
        %s417 = smul.addr %s416, 8
        %s418 = scalar_lea.vmem [#allocation13], %s417
        %p419 = scmp.lt.s32.totalorder %s34, 0
        %s420 = scalar_select %p419, %s34, 0
        %s421 = smul.addr %s420, 4
        %s422 = smul.addr %s421, 4
        %s423 = scalar_lea.vmem %s5, %s422
        %p427 = scmp.eq.s32.totalorder %s33, 0
        // Predicated region
        $region65: #{tpu_custom_call.1} parent=43 // pred_check
          %p428 = pneg %p427
        $region66: #{tpu_custom_call.1} parent=43 // pred_check_branch
          %430 = sbr.rel (%p428) target = $region68
        $region67: #{tpu_custom_call.1} parent=43 // pred_region
          %v431 = vld [vmem:[%s358] sm:$0xf]
          %v432 = vld [vmem:[%s367] sm:$0xf]
          %s433 = scalar_lea.vmem [#allocation12], 16
          %v434 = vld [vmem:[%s433] sm:$0xf]
          %v435 = vld [vmem:[%s433 + $0x4] sm:$0xf]
          %v436 = vld [vmem:[%s433 + $0x8] sm:$0xf]
          %v437 = vld [vmem:[%s433 + $0xc] sm:$0xf]
          %v442 = vunpack.c.l.b16 %v434
          %v443 = vunpack.c.l.b16 %v435
          %v444 = vunpack.c.l.b16 %v436
          %v445 = vunpack.c.l.b16 %v437
          %v446 = vpack.c.b16 %v443, %v442
          %v447 = vpack.c.b16 %v445, %v444
          %vm450 = vcmask 261120
          %v452 = vsel %vm450, %v431, 0
          %454 = vmatprep.subr.bf16.mxu0 0
          %455 = vmatpush1.bf16.msra.mxu0 %v446
          %456 = vmatprep.subr.bf16.mxu0 0
          %457 = vmatpush1.bf16.msra.mxu0 %v447
          %458 = vmatprep.subr.bf16.mxu0 0
          %459 = vmatpush1.bf16.msra.mxu0 0
          %460 = vmatprep.subr.bf16.mxu0 0
          %461 = vmatpush1.bf16.msra.mxu0 0
          %462 = vmatprep.subr.bf16.mxu0 0
          %463 = vmatpush1.bf16.msra.mxu0 0
          %464 = vmatprep.subr.bf16.mxu0 0
          %465 = vmatpush1.bf16.msra.mxu0 0
          %466 = vmatprep.subr.bf16.mxu0 0
          %467 = vmatpush1.bf16.msra.mxu0 0
          %468 = vmatprep.subr.bf16.mxu0 0
          %469 = vmatpush1.bf16.msra.mxu0 0
          %470 = vmatprep.subr.bf16.mxu0 0
          %471 = vmatpush1.bf16.msra.mxu0 0
          %472 = vmatprep.subr.bf16.mxu0 0
          %473 = vmatpush1.bf16.msra.mxu0 0
          %474 = vmatprep.subr.bf16.mxu0 0
          %475 = vmatpush1.bf16.msra.mxu0 0
          %476 = vmatprep.subr.bf16.mxu0 0
          %477 = vmatpush1.bf16.msra.mxu0 0
          %478 = vmatprep.subr.bf16.mxu0 0
          %479 = vmatpush1.bf16.msra.mxu0 0
          %480 = vmatprep.subr.bf16.mxu0 0
          %481 = vmatpush1.bf16.msra.mxu0 0
          %482 = vmatprep.subr.bf16.mxu0 0
          %483 = vmatpush1.bf16.msra.mxu0 0
          %484 = vmatprep.subr.bf16.mxu0 0
          %485 = vmatpush1.bf16.msra.mxu0 0
          %486 = vmatprep.mubr.bf16.mxu0 0
          %487 = vmatmul.mubr.bf16.gmra.mrb[0].mxu0 %v452
          %v488 = vpop.f32.mrb[0].mxu0
          %v489 = vadd.f32 0.0, %v488
          %v490 = vpop.f32.mrb[0].mxu0
          %v491 = vpop.f32.mrb[0].mxu0
          %v492 = vpop.f32.mrb[0].mxu0
          %493 = vdwg.mxu0
          %v494 = vpack.c.bf16 %v489, %v489
          %s495 = smul.addr %s34, 4
          %s496 = scalar_lea.vmem [#allocation2], %s495
          %vm497 = vcmask 257024
          %498 = vst.msk [vmem:[%s496] sm:$0xf] %vm497, %v494
          %s499 = scalar_lea.vmem [#allocation12], 32
          %v500 = vld [vmem:[%s499] sm:$0xf]
          %v501 = vld [vmem:[%s499 + $0x4] sm:$0xf]
          %v502 = vld [vmem:[%s499 + $0x8] sm:$0xf]
          %v503 = vld [vmem:[%s499 + $0xc] sm:$0xf]
          %v508 = vunpack.c.l.b16 %v500
          %v509 = vunpack.c.l.b16 %v501
          %v510 = vunpack.c.l.b16 %v502
          %v511 = vunpack.c.l.b16 %v503
          %v512 = vpack.c.b16 %v509, %v508
          %v513 = vpack.c.b16 %v511, %v510
          %v517 = vsel %vm450, %v432, 0
          %519 = vmatprep.subr.bf16.mxu0 0
          %520 = vmatpush1.bf16.msra.mxu0 %v512
          %521 = vmatprep.subr.bf16.mxu0 0
          %522 = vmatpush1.bf16.msra.mxu0 %v513
          %523 = vmatprep.subr.bf16.mxu0 0
          %524 = vmatpush1.bf16.msra.mxu0 0
          %525 = vmatprep.subr.bf16.mxu0 0
          %526 = vmatpush1.bf16.msra.mxu0 0
          %527 = vmatprep.subr.bf16.mxu0 0
          %528 = vmatpush1.bf16.msra.mxu0 0
          %529 = vmatprep.subr.bf16.mxu0 0
          %530 = vmatpush1.bf16.msra.mxu0 0
          %531 = vmatprep.subr.bf16.mxu0 0
          %532 = vmatpush1.bf16.msra.mxu0 0
          %533 = vmatprep.subr.bf16.mxu0 0
          %534 = vmatpush1.bf16.msra.mxu0 0
          %535 = vmatprep.subr.bf16.mxu0 0
          %536 = vmatpush1.bf16.msra.mxu0 0
          %537 = vmatprep.subr.bf16.mxu0 0
          %538 = vmatpush1.bf16.msra.mxu0 0
          %539 = vmatprep.subr.bf16.mxu0 0
          %540 = vmatpush1.bf16.msra.mxu0 0
          %541 = vmatprep.subr.bf16.mxu0 0
          %542 = vmatpush1.bf16.msra.mxu0 0
          %543 = vmatprep.subr.bf16.mxu0 0
          %544 = vmatpush1.bf16.msra.mxu0 0
          %545 = vmatprep.subr.bf16.mxu0 0
          %546 = vmatpush1.bf16.msra.mxu0 0
          %547 = vmatprep.subr.bf16.mxu0 0
          %548 = vmatpush1.bf16.msra.mxu0 0
          %549 = vmatprep.subr.bf16.mxu0 0
          %550 = vmatpush1.bf16.msra.mxu0 0
          %551 = vmatprep.mubr.bf16.mxu0 0
          %552 = vmatmul.mubr.bf16.gmra.mrb[0].mxu0 %v517
          %v553 = vpop.f32.mrb[0].mxu0
          %v554 = vadd.f32 0.0, %v553
          %v555 = vpop.f32.mrb[0].mxu0
          %v556 = vpop.f32.mrb[0].mxu0
          %v557 = vpop.f32.mrb[0].mxu0
          %558 = vdwg.mxu0
          %v559 = vpack.c.bf16 %v554, %v554
          %s560 = smul.addr %s34, 4
          %s561 = scalar_lea.vmem [#allocation3], %s560
          %562 = vst.msk [vmem:[%s561] sm:$0xf] %vm497, %v559
        $region68: #{tpu_custom_call.1} parent=43 // pred_fallthru
          _
        %v563 = vld [vmem:[%s349] sm:$0xf]
        %v564 = vld [vmem:[#allocation12] sm:$0xf]
        %v565 = vld [vmem:[#allocation12 + $0x4] sm:$0xf]
        %v566 = vld [vmem:[#allocation12 + $0x8] sm:$0xf]
        %v567 = vld [vmem:[#allocation12 + $0xc] sm:$0xf]
        %v572 = vunpack.c.l.b16 %v564
        %v573 = vunpack.c.l.b16 %v565
        %v574 = vunpack.c.l.b16 %v566
        %v575 = vunpack.c.l.b16 %v567
        %v576 = vpack.c.b16 %v573, %v572
        %v577 = vpack.c.b16 %v575, %v574
        %vm580 = vcmask 261120
        %v582 = vsel %vm580, %v563, 0
        %584 = vmatprep.subr.bf16.mxu0 0
        %585 = vmatpush1.bf16.msra.mxu0 %v576
        %586 = vmatprep.subr.bf16.mxu0 0
        %587 = vmatpush1.bf16.msra.mxu0 %v577
        %588 = vmatprep.subr.bf16.mxu0 0
        %589 = vmatpush1.bf16.msra.mxu0 0
        %590 = vmatprep.subr.bf16.mxu0 0
        %591 = vmatpush1.bf16.msra.mxu0 0
        %592 = vmatprep.subr.bf16.mxu0 0
        %593 = vmatpush1.bf16.msra.mxu0 0
        %594 = vmatprep.subr.bf16.mxu0 0
        %595 = vmatpush1.bf16.msra.mxu0 0
        %596 = vmatprep.subr.bf16.mxu0 0
        %597 = vmatpush1.bf16.msra.mxu0 0
        %598 = vmatprep.subr.bf16.mxu0 0
        %599 = vmatpush1.bf16.msra.mxu0 0
        %600 = vmatprep.subr.bf16.mxu0 0
        %601 = vmatpush1.bf16.msra.mxu0 0
        %602 = vmatprep.subr.bf16.mxu0 0
        %603 = vmatpush1.bf16.msra.mxu0 0
        %604 = vmatprep.subr.bf16.mxu0 0
        %605 = vmatpush1.bf16.msra.mxu0 0
        %606 = vmatprep.subr.bf16.mxu0 0
        %607 = vmatpush1.bf16.msra.mxu0 0
        %608 = vmatprep.subr.bf16.mxu0 0
        %609 = vmatpush1.bf16.msra.mxu0 0
        %610 = vmatprep.subr.bf16.mxu0 0
        %611 = vmatpush1.bf16.msra.mxu0 0
        %612 = vmatprep.subr.bf16.mxu0 0
        %613 = vmatpush1.bf16.msra.mxu0 0
        %614 = vmatprep.subr.bf16.mxu0 0
        %615 = vmatpush1.bf16.msra.mxu0 0
        %616 = vmatprep.mubr.bf16.mxu0 0
        %617 = vmatmul.mubr.bf16.gmra.mrb[0].mxu0 %v582
        %v618 = vpop.f32.mrb[0].mxu0
        %v619 = vadd.f32 0.0, %v618
        %v620 = vpop.f32.mrb[0].mxu0
        %v621 = vpop.f32.mrb[0].mxu0
        %v622 = vpop.f32.mrb[0].mxu0
        %623 = vdwg.mxu0
        %v624 = vpack.c.bf16 %v619, %v619
        %s625 = smul.addr %s34, 4
        %s626 = scalar_lea.vmem [#allocation2], %s625
        %v627 = vld [vmem:[%s626] sm:$0xf]
        %s628 = smul.addr %s34, 4
        %s629 = scalar_lea.vmem [#allocation3], %s628
        %v630 = vld [vmem:[%s629] sm:$0xf]
        %v631 = vld [vmem:[#allocation10] sm:$0xf]
        %vm632 = vcmp.ne.bf16.partialorder %v631, 0
        %vm633 = vcmask 64512
        %v635 = vsel %vm633, %v624, 0
        %v638 = vsel %vm633, %v627, 0
        %640 = vmatprep.subr.bf16.mxu0 0
        %641 = vmatpush1.bf16.xpose.msra.mxu0 %v638
        %642 = vmatprep.subr.bf16.mxu0 0
        %643 = vmatpush1.bf16.xpose.msra.mxu0 0
        %644 = vmatprep.subr.bf16.mxu0 0
        %645 = vmatpush1.bf16.xpose.msra.mxu0 0
        %646 = vmatprep.subr.bf16.mxu0 0
        %647 = vmatpush1.bf16.xpose.msra.mxu0 0
        %648 = vmatprep.subr.bf16.mxu0 0
        %649 = vmatpush1.bf16.xpose.msra.mxu0 0
        %650 = vmatprep.subr.bf16.mxu0 0
        %651 = vmatpush1.bf16.xpose.msra.mxu0 0
        %652 = vmatprep.subr.bf16.mxu0 0
        %653 = vmatpush1.bf16.xpose.msra.mxu0 0
        %654 = vmatprep.subr.bf16.mxu0 0
        %655 = vmatpush1.bf16.xpose.msra.mxu0 0
        %656 = vmatprep.subr.bf16.mxu0 0
        %657 = vmatpush1.bf16.xpose.msra.mxu0 0
        %658 = vmatprep.subr.bf16.mxu0 0
        %659 = vmatpush1.bf16.xpose.msra.mxu0 0
        %660 = vmatprep.subr.bf16.mxu0 0
        %661 = vmatpush1.bf16.xpose.msra.mxu0 0
        %662 = vmatprep.subr.bf16.mxu0 0
        %663 = vmatpush1.bf16.xpose.msra.mxu0 0
        %664 = vmatprep.subr.bf16.mxu0 0
        %665 = vmatpush1.bf16.xpose.msra.mxu0 0
        %666 = vmatprep.subr.bf16.mxu0 0
        %667 = vmatpush1.bf16.xpose.msra.mxu0 0
        %668 = vmatprep.subr.bf16.mxu0 0
        %669 = vmatpush1.bf16.xpose.msra.mxu0 0
        %670 = vmatprep.subr.bf16.mxu0 0
        %671 = vmatpush1.bf16.xpose.msra.mxu0 0
        %672 = vmatprep.mubr.bf16.mxu0 0
        %673 = vmatmul.mubr.bf16.gmra.mrb[0].mxu0 %v635
        %v674 = vpop.f32.mrb[0].mxu0
        %v675 = vadd.f32 0.0, %v674
        %v676 = vpop.f32.mrb[0].mxu0
        %v677 = vpop.f32.mrb[0].mxu0
        %v678 = vpop.f32.mrb[0].mxu0
        %679 = vdwg.mxu0
        %v680 = vsel %vm632, 65537, 0
        %v681 = vunpack.c.l.b16 %v680
        %vm682 = vcmp.ne.s32.totalorder %v681, 0
        %v683 = vsel %vm682, %v675, -1e+09
        %v684 = vsel %vm633, %v683, -inf
        %685 = vmax.xlane.f32.xlu0 %v684
        %v686 = vpop.xlane.xlu0 %685
        %v687 = vsub.f32 %v683, %v686
        %v688 = vmul.f32 %v687, 1.442695
        %v689 = vpow.pop %v688
        %v690 = vsel %vm633, %v689, 0.0
        %691 = vadd.xlane.f32.xlu0 %v690
        %v692 = vpop.xlane.xlu0 %691
        %v693 = vrcp.pop %v692
        %v694 = vmul.f32 %v689, %v693
        %v695 = vpack.c.bf16 %v694, %v694
        %v697 = vsel %vm633, %v695, 0
        %vm699 = vcmask 1043456
        %v701 = vsel %vm699, %v630, 0
        %703 = vmatprep.subr.bf16.mxu0 0
        %704 = vmatpush1.bf16.msra.mxu0 %v701
        %705 = vmatprep.subr.bf16.mxu0 0
        %706 = vmatpush1.bf16.msra.mxu0 0
        %707 = vmatprep.subr.bf16.mxu0 0
        %708 = vmatpush1.bf16.msra.mxu0 0
        %709 = vmatprep.subr.bf16.mxu0 0
        %710 = vmatpush1.bf16.msra.mxu0 0
        %711 = vmatprep.subr.bf16.mxu0 0
        %712 = vmatpush1.bf16.msra.mxu0 0
        %713 = vmatprep.subr.bf16.mxu0 0
        %714 = vmatpush1.bf16.msra.mxu0 0
        %715 = vmatprep.subr.bf16.mxu0 0
        %716 = vmatpush1.bf16.msra.mxu0 0
        %717 = vmatprep.subr.bf16.mxu0 0
        %718 = vmatpush1.bf16.msra.mxu0 0
        %719 = vmatprep.subr.bf16.mxu0 0
        %720 = vmatpush1.bf16.msra.mxu0 0
        %721 = vmatprep.subr.bf16.mxu0 0
        %722 = vmatpush1.bf16.msra.mxu0 0
        %723 = vmatprep.subr.bf16.mxu0 0
        %724 = vmatpush1.bf16.msra.mxu0 0
        %725 = vmatprep.subr.bf16.mxu0 0
        %726 = vmatpush1.bf16.msra.mxu0 0
        %727 = vmatprep.subr.bf16.mxu0 0
        %728 = vmatpush1.bf16.msra.mxu0 0
        %729 = vmatprep.subr.bf16.mxu0 0
        %730 = vmatpush1.bf16.msra.mxu0 0
        %731 = vmatprep.subr.bf16.mxu0 0
        %732 = vmatpush1.bf16.msra.mxu0 0
        %733 = vmatprep.subr.bf16.mxu0 0
        %734 = vmatpush1.bf16.msra.mxu0 0
        %735 = vmatprep.mubr.bf16.mxu0 0
        %736 = vmatmul.mubr.bf16.gmra.mrb[0].mxu0 %v697
        %v737 = vpop.f32.mrb[0].mxu0
        %v738 = vadd.f32 0.0, %v737
        %v739 = vpop.f32.mrb[0].mxu0
        %v740 = vpop.f32.mrb[0].mxu0
        %v741 = vpop.f32.mrb[0].mxu0
        %742 = vdwg.mxu0
        %v743 = vpack.c.bf16 %v738, %v738
        %745 = vrot.lane.b32.xlu0 %v624, 120
        %v746 = vpop.permute.xlu0 %745
        %v748 = vunpack.c.l.b16 %v627
        %v749 = vpack.c.b16 %v748, %v748
        %750 = vrot.lane.b32.xlu0 %v749, 120
        %v751 = vpop.permute.xlu0 %750
        %v753 = vsel %vm633, %v746, 0
        %v756 = vsel %vm633, %v751, 0
        %758 = vmatprep.subr.bf16.mxu0 0
        %759 = vmatpush1.bf16.xpose.msra.mxu0 %v756
        %760 = vmatprep.subr.bf16.mxu0 0
        %761 = vmatpush1.bf16.xpose.msra.mxu0 0
        %762 = vmatprep.subr.bf16.mxu0 0
        %763 = vmatpush1.bf16.xpose.msra.mxu0 0
        %764 = vmatprep.subr.bf16.mxu0 0
        %765 = vmatpush1.bf16.xpose.msra.mxu0 0
        %766 = vmatprep.subr.bf16.mxu0 0
        %767 = vmatpush1.bf16.xpose.msra.mxu0 0
        %768 = vmatprep.subr.bf16.mxu0 0
        %769 = vmatpush1.bf16.xpose.msra.mxu0 0
        %770 = vmatprep.subr.bf16.mxu0 0
        %771 = vmatpush1.bf16.xpose.msra.mxu0 0
        %772 = vmatprep.subr.bf16.mxu0 0
        %773 = vmatpush1.bf16.xpose.msra.mxu0 0
        %774 = vmatprep.subr.bf16.mxu0 0
        %775 = vmatpush1.bf16.xpose.msra.mxu0 0
        %776 = vmatprep.subr.bf16.mxu0 0
        %777 = vmatpush1.bf16.xpose.msra.mxu0 0
        %778 = vmatprep.subr.bf16.mxu0 0
        %779 = vmatpush1.bf16.xpose.msra.mxu0 0
        %780 = vmatprep.subr.bf16.mxu0 0
        %781 = vmatpush1.bf16.xpose.msra.mxu0 0
        %782 = vmatprep.subr.bf16.mxu0 0
        %783 = vmatpush1.bf16.xpose.msra.mxu0 0
        %784 = vmatprep.subr.bf16.mxu0 0
        %785 = vmatpush1.bf16.xpose.msra.mxu0 0
        %786 = vmatprep.subr.bf16.mxu0 0
        %787 = vmatpush1.bf16.xpose.msra.mxu0 0
        %788 = vmatprep.subr.bf16.mxu0 0
        %789 = vmatpush1.bf16.xpose.msra.mxu0 0
        %790 = vmatprep.mubr.bf16.mxu0 0
        %791 = vmatmul.mubr.bf16.gmra.mrb[0].mxu0 %v753
        %v792 = vpop.f32.mrb[0].mxu0
        %v793 = vadd.f32 0.0, %v792
        %v794 = vpop.f32.mrb[0].mxu0
        %v795 = vpop.f32.mrb[0].mxu0
        %v796 = vpop.f32.mrb[0].mxu0
        %797 = vdwg.mxu0
        %v798 = vsel %vm682, %v793, -1e+09
        %v799 = vsel %vm633, %v798, -inf
        %800 = vmax.xlane.f32.xlu0 %v799
        %v801 = vpop.xlane.xlu0 %800
        %v802 = vsub.f32 %v798, %v801
        %v803 = vmul.f32 %v802, 1.442695
        %v804 = vpow.pop %v803
        %v805 = vsel %vm633, %v804, 0.0
        %806 = vadd.xlane.f32.xlu0 %v805
        %v807 = vpop.xlane.xlu0 %806
        %v808 = vrcp.pop %v807
        %v809 = vmul.f32 %v804, %v808
        %v810 = vpack.c.bf16 %v809, %v809
        %v812 = vunpack.c.l.b16 %v630
        %v813 = vpack.c.b16 %v812, %v812
        %814 = vrot.lane.b32.xlu0 %v813, 120
        %v815 = vpop.permute.xlu0 %814
        %v817 = vsel %vm633, %v810, 0
        %v820 = vsel %vm699, %v815, 0
        %822 = vmatprep.subr.bf16.mxu0 0
        %823 = vmatpush1.bf16.msra.mxu0 %v820
        %824 = vmatprep.subr.bf16.mxu0 0
        %825 = vmatpush1.bf16.msra.mxu0 0
        %826 = vmatprep.subr.bf16.mxu0 0
        %827 = vmatpush1.bf16.msra.mxu0 0
        %828 = vmatprep.subr.bf16.mxu0 0
        %829 = vmatpush1.bf16.msra.mxu0 0
        %830 = vmatprep.subr.bf16.mxu0 0
        %831 = vmatpush1.bf16.msra.mxu0 0
        %832 = vmatprep.subr.bf16.mxu0 0
        %833 = vmatpush1.bf16.msra.mxu0 0
        %834 = vmatprep.subr.bf16.mxu0 0
        %835 = vmatpush1.bf16.msra.mxu0 0
        %836 = vmatprep.subr.bf16.mxu0 0
        %837 = vmatpush1.bf16.msra.mxu0 0
        %838 = vmatprep.subr.bf16.mxu0 0
        %839 = vmatpush1.bf16.msra.mxu0 0
        %840 = vmatprep.subr.bf16.mxu0 0
        %841 = vmatpush1.bf16.msra.mxu0 0
        %842 = vmatprep.subr.bf16.mxu0 0
        %843 = vmatpush1.bf16.msra.mxu0 0
        %844 = vmatprep.subr.bf16.mxu0 0
        %845 = vmatpush1.bf16.msra.mxu0 0
        %846 = vmatprep.subr.bf16.mxu0 0
        %847 = vmatpush1.bf16.msra.mxu0 0
        %848 = vmatprep.subr.bf16.mxu0 0
        %849 = vmatpush1.bf16.msra.mxu0 0
        %850 = vmatprep.subr.bf16.mxu0 0
        %851 = vmatpush1.bf16.msra.mxu0 0
        %852 = vmatprep.subr.bf16.mxu0 0
        %853 = vmatpush1.bf16.msra.mxu0 0
        %854 = vmatprep.mubr.bf16.mxu0 0
        %855 = vmatmul.mubr.bf16.gmra.mrb[0].mxu0 %v817
        %v856 = vpop.f32.mrb[0].mxu0
        %v857 = vadd.f32 0.0, %v856
        %v858 = vpop.f32.mrb[0].mxu0
        %v859 = vpop.f32.mrb[0].mxu0
        %v860 = vpop.f32.mrb[0].mxu0
        %861 = vdwg.mxu0
        %v862 = vpack.c.bf16 %v857, %v857
        %863 = vrot.lane.b32.xlu0 %v624, 112
        %v864 = vpop.permute.xlu0 %863
        %865 = vrot.lane.b32.xlu0 %v749, 112
        %v866 = vpop.permute.xlu0 %865
        %v868 = vsel %vm633, %v864, 0
        %v871 = vsel %vm633, %v866, 0
        %873 = vmatprep.subr.bf16.mxu0 0
        %874 = vmatpush1.bf16.xpose.msra.mxu0 %v871
        %875 = vmatprep.subr.bf16.mxu0 0
        %876 = vmatpush1.bf16.xpose.msra.mxu0 0
        %877 = vmatprep.subr.bf16.mxu0 0
        %878 = vmatpush1.bf16.xpose.msra.mxu0 0
        %879 = vmatprep.subr.bf16.mxu0 0
        %880 = vmatpush1.bf16.xpose.msra.mxu0 0
        %881 = vmatprep.subr.bf16.mxu0 0
        %882 = vmatpush1.bf16.xpose.msra.mxu0 0
        %883 = vmatprep.subr.bf16.mxu0 0
        %884 = vmatpush1.bf16.xpose.msra.mxu0 0
        %885 = vmatprep.subr.bf16.mxu0 0
        %886 = vmatpush1.bf16.xpose.msra.mxu0 0
        %887 = vmatprep.subr.bf16.mxu0 0
        %888 = vmatpush1.bf16.xpose.msra.mxu0 0
        %889 = vmatprep.subr.bf16.mxu0 0
        %890 = vmatpush1.bf16.xpose.msra.mxu0 0
        %891 = vmatprep.subr.bf16.mxu0 0
        %892 = vmatpush1.bf16.xpose.msra.mxu0 0
        %893 = vmatprep.subr.bf16.mxu0 0
        %894 = vmatpush1.bf16.xpose.msra.mxu0 0
        %895 = vmatprep.subr.bf16.mxu0 0
        %896 = vmatpush1.bf16.xpose.msra.mxu0 0
        %897 = vmatprep.subr.bf16.mxu0 0
        %898 = vmatpush1.bf16.xpose.msra.mxu0 0
        %899 = vmatprep.subr.bf16.mxu0 0
        %900 = vmatpush1.bf16.xpose.msra.mxu0 0
        %901 = vmatprep.subr.bf16.mxu0 0
        %902 = vmatpush1.bf16.xpose.msra.mxu0 0
        %903 = vmatprep.subr.bf16.mxu0 0
        %904 = vmatpush1.bf16.xpose.msra.mxu0 0
        %905 = vmatprep.mubr.bf16.mxu0 0
        %906 = vmatmul.mubr.bf16.gmra.mrb[0].mxu0 %v868
        %v907 = vpop.f32.mrb[0].mxu0
        %v908 = vadd.f32 0.0, %v907
        %v909 = vpop.f32.mrb[0].mxu0
        %v910 = vpop.f32.mrb[0].mxu0
        %v911 = vpop.f32.mrb[0].mxu0
        %912 = vdwg.mxu0
        %v913 = vsel %vm682, %v908, -1e+09
        %v914 = vsel %vm633, %v913, -inf
        %915 = vmax.xlane.f32.xlu0 %v914
        %v916 = vpop.xlane.xlu0 %915
        %v917 = vsub.f32 %v913, %v916
        %v918 = vmul.f32 %v917, 1.442695
        %v919 = vpow.pop %v918
        %v920 = vsel %vm633, %v919, 0.0
        %921 = vadd.xlane.f32.xlu0 %v920
        %v922 = vpop.xlane.xlu0 %921
        %v923 = vrcp.pop %v922
        %v924 = vmul.f32 %v919, %v923
        %v925 = vpack.c.bf16 %v924, %v924
        %926 = vrot.lane.b32.xlu0 %v813, 112
        %v927 = vpop.permute.xlu0 %926
        %v929 = vsel %vm633, %v925, 0
        %v932 = vsel %vm699, %v927, 0
        %934 = vmatprep.subr.bf16.mxu0 0
        %935 = vmatpush1.bf16.msra.mxu0 %v932
        %936 = vmatprep.subr.bf16.mxu0 0
        %937 = vmatpush1.bf16.msra.mxu0 0
        %938 = vmatprep.subr.bf16.mxu0 0
        %939 = vmatpush1.bf16.msra.mxu0 0
        %940 = vmatprep.subr.bf16.mxu0 0
        %941 = vmatpush1.bf16.msra.mxu0 0
        %942 = vmatprep.subr.bf16.mxu0 0
        %943 = vmatpush1.bf16.msra.mxu0 0
        %944 = vmatprep.subr.bf16.mxu0 0
        %945 = vmatpush1.bf16.msra.mxu0 0
        %946 = vmatprep.subr.bf16.mxu0 0
        %947 = vmatpush1.bf16.msra.mxu0 0
        %948 = vmatprep.subr.bf16.mxu0 0
        %949 = vmatpush1.bf16.msra.mxu0 0
        %950 = vmatprep.subr.bf16.mxu0 0
        %951 = vmatpush1.bf16.msra.mxu0 0
        %952 = vmatprep.subr.bf16.mxu0 0
        %953 = vmatpush1.bf16.msra.mxu0 0
        %954 = vmatprep.subr.bf16.mxu0 0
        %955 = vmatpush1.bf16.msra.mxu0 0
        %956 = vmatprep.subr.bf16.mxu0 0
        %957 = vmatpush1.bf16.msra.mxu0 0
        %958 = vmatprep.subr.bf16.mxu0 0
        %959 = vmatpush1.bf16.msra.mxu0 0
        %960 = vmatprep.subr.bf16.mxu0 0
        %961 = vmatpush1.bf16.msra.mxu0 0
        %962 = vmatprep.subr.bf16.mxu0 0
        %963 = vmatpush1.bf16.msra.mxu0 0
        %964 = vmatprep.subr.bf16.mxu0 0
        %965 = vmatpush1.bf16.msra.mxu0 0
        %966 = vmatprep.mubr.bf16.mxu0 0
        %967 = vmatmul.mubr.bf16.gmra.mrb[0].mxu0 %v929
        %v968 = vpop.f32.mrb[0].mxu0
        %v969 = vadd.f32 0.0, %v968
        %v970 = vpop.f32.mrb[0].mxu0
        %v971 = vpop.f32.mrb[0].mxu0
        %v972 = vpop.f32.mrb[0].mxu0
        %973 = vdwg.mxu0
        %v974 = vpack.c.bf16 %v969, %v969
        %975 = vrot.lane.b32.xlu0 %v624, 104
        %v976 = vpop.permute.xlu0 %975
        %977 = vrot.lane.b32.xlu0 %v749, 104
        %v978 = vpop.permute.xlu0 %977
        %v980 = vsel %vm633, %v976, 0
        %v983 = vsel %vm633, %v978, 0
        %985 = vmatprep.subr.bf16.mxu0 0
        %986 = vmatpush1.bf16.xpose.msra.mxu0 %v983
        %987 = vmatprep.subr.bf16.mxu0 0
        %988 = vmatpush1.bf16.xpose.msra.mxu0 0
        %989 = vmatprep.subr.bf16.mxu0 0
        %990 = vmatpush1.bf16.xpose.msra.mxu0 0
        %991 = vmatprep.subr.bf16.mxu0 0
        %992 = vmatpush1.bf16.xpose.msra.mxu0 0
        %993 = vmatprep.subr.bf16.mxu0 0
        %994 = vmatpush1.bf16.xpose.msra.mxu0 0
        %995 = vmatprep.subr.bf16.mxu0 0
        %996 = vmatpush1.bf16.xpose.msra.mxu0 0
        %997 = vmatprep.subr.bf16.mxu0 0
        %998 = vmatpush1.bf16.xpose.msra.mxu0 0
        %999 = vmatprep.subr.bf16.mxu0 0
        %1000 = vmatpush1.bf16.xpose.msra.mxu0 0
        %1001 = vmatprep.subr.bf16.mxu0 0
        %1002 = vmatpush1.bf16.xpose.msra.mxu0 0
        %1003 = vmatprep.subr.bf16.mxu0 0
        %1004 = vmatpush1.bf16.xpose.msra.mxu0 0
        %1005 = vmatprep.subr.bf16.mxu0 0
        %1006 = vmatpush1.bf16.xpose.msra.mxu0 0
        %1007 = vmatprep.subr.bf16.mxu0 0
        %1008 = vmatpush1.bf16.xpose.msra.mxu0 0
        %1009 = vmatprep.subr.bf16.mxu0 0
        %1010 = vmatpush1.bf16.xpose.msra.mxu0 0
        %1011 = vmatprep.subr.bf16.mxu0 0
        %1012 = vmatpush1.bf16.xpose.msra.mxu0 0
        %1013 = vmatprep.subr.bf16.mxu0 0
        %1014 = vmatpush1.bf16.xpose.msra.mxu0 0
        %1015 = vmatprep.subr.bf16.mxu0 0
        %1016 = vmatpush1.bf16.xpose.msra.mxu0 0
        %1017 = vmatprep.mubr.bf16.mxu0 0
        %1018 = vmatmul.mubr.bf16.gmra.mrb[0].mxu0 %v980
        %v1019 = vpop.f32.mrb[0].mxu0
        %v1020 = vadd.f32 0.0, %v1019
        %v1021 = vpop.f32.mrb[0].mxu0
        %v1022 = vpop.f32.mrb[0].mxu0
        %v1023 = vpop.f32.mrb[0].mxu0
        %1024 = vdwg.mxu0
        %v1025 = vsel %vm682, %v1020, -1e+09
        %v1026 = vsel %vm633, %v1025, -inf
        %1027 = vmax.xlane.f32.xlu0 %v1026
        %v1028 = vpop.xlane.xlu0 %1027
        %v1029 = vsub.f32 %v1025, %v1028
        %v1030 = vmul.f32 %v1029, 1.442695
        %v1031 = vpow.pop %v1030
        %v1032 = vsel %vm633, %v1031, 0.0
        %1033 = vadd.xlane.f32.xlu0 %v1032
        %v1034 = vpop.xlane.xlu0 %1033
        %v1035 = vrcp.pop %v1034
        %v1036 = vmul.f32 %v1031, %v1035
        %v1037 = vpack.c.bf16 %v1036, %v1036
        %1038 = vrot.lane.b32.xlu0 %v813, 104
        %v1039 = vpop.permute.xlu0 %1038
        %v1041 = vsel %vm633, %v1037, 0
        %v1044 = vsel %vm699, %v1039, 0
        %1046 = vmatprep.subr.bf16.mxu0 0
        %1047 = vmatpush1.bf16.msra.mxu0 %v1044
        %1048 = vmatprep.subr.bf16.mxu0 0
        %1049 = vmatpush1.bf16.msra.mxu0 0
        %1050 = vmatprep.subr.bf16.mxu0 0
        %1051 = vmatpush1.bf16.msra.mxu0 0
        %1052 = vmatprep.subr.bf16.mxu0 0
        %1053 = vmatpush1.bf16.msra.mxu0 0
        %1054 = vmatprep.subr.bf16.mxu0 0
        %1055 = vmatpush1.bf16.msra.mxu0 0
        %1056 = vmatprep.subr.bf16.mxu0 0
        %1057 = vmatpush1.bf16.msra.mxu0 0
        %1058 = vmatprep.subr.bf16.mxu0 0
        %1059 = vmatpush1.bf16.msra.mxu0 0
        %1060 = vmatprep.subr.bf16.mxu0 0
        %1061 = vmatpush1.bf16.msra.mxu0 0
        %1062 = vmatprep.subr.bf16.mxu0 0
        %1063 = vmatpush1.bf16.msra.mxu0 0
        %1064 = vmatprep.subr.bf16.mxu0 0
        %1065 = vmatpush1.bf16.msra.mxu0 0
        %1066 = vmatprep.subr.bf16.mxu0 0
        %1067 = vmatpush1.bf16.msra.mxu0 0
        %1068 = vmatprep.subr.bf16.mxu0 0
        %1069 = vmatpush1.bf16.msra.mxu0 0
        %1070 = vmatprep.subr.bf16.mxu0 0
        %1071 = vmatpush1.bf16.msra.mxu0 0
        %1072 = vmatprep.subr.bf16.mxu0 0
        %1073 = vmatpush1.bf16.msra.mxu0 0
        %1074 = vmatprep.subr.bf16.mxu0 0
        %1075 = vmatpush1.bf16.msra.mxu0 0
        %1076 = vmatprep.subr.bf16.mxu0 0
        %1077 = vmatpush1.bf16.msra.mxu0 0
        %1078 = vmatprep.mubr.bf16.mxu0 0
        %1079 = vmatmul.mubr.bf16.gmra.mrb[0].mxu0 %v1041
        %v1080 = vpop.f32.mrb[0].mxu0
        %v1081 = vadd.f32 0.0, %v1080
        %v1082 = vpop.f32.mrb[0].mxu0
        %v1083 = vpop.f32.mrb[0].mxu0
        %v1084 = vpop.f32.mrb[0].mxu0
        %1085 = vdwg.mxu0
        %v1086 = vpack.c.bf16 %v1081, %v1081
        %1088 = vrot.lane.b32.xlu0 %v862, 8
        %v1089 = vpop.permute.xlu0 %1088
        %1091 = vrot.lane.b32.xlu0 %v974, 16
        %v1092 = vpop.permute.xlu0 %1091
        %1094 = vrot.lane.b32.xlu0 %v1086, 24
        %v1095 = vpop.permute.xlu0 %1094
        %v1098 = vsel %vm633, %v743, %v1089
        %vm1099 = vcmask 130048
        %v1101 = vsel %vm1099, %v1098, %v1092
        %vm1102 = vcmask 195584
        %v1104 = vsel %vm1102, %v1101, %v1095
        %v1105 = vld [vmem:[%s423] sm:$0xf]
        %v1106 = vld [vmem:[%s423 + $0x4] sm:$0xf]
        %v1107 = vld [vmem:[%s423 + $0x8] sm:$0xf]
        %v1108 = vld [vmem:[%s423 + $0xc] sm:$0xf]
        %v1113 = vunpack.c.l.b16 %v1105
        %v1114 = vunpack.c.l.b16 %v1106
        %v1115 = vunpack.c.l.b16 %v1107
        %v1116 = vunpack.c.l.b16 %v1108
        %v1117 = vpack.c.b16 %v1114, %v1113
        %v1118 = vpack.c.b16 %v1116, %v1115
        %v1121 = vsel %vm580, %v1104, 0
        %1123 = vmatprep.subr.bf16.mxu0 0
        %1124 = vmatpush1.bf16.msra.mxu0 %v1117
        %1125 = vmatprep.subr.bf16.mxu0 0
        %1126 = vmatpush1.bf16.msra.mxu0 %v1118
        %1127 = vmatprep.subr.bf16.mxu0 0
        %1128 = vmatpush1.bf16.msra.mxu0 0
        %1129 = vmatprep.subr.bf16.mxu0 0
        %1130 = vmatpush1.bf16.msra.mxu0 0
        %1131 = vmatprep.subr.bf16.mxu0 0
        %1132 = vmatpush1.bf16.msra.mxu0 0
        %1133 = vmatprep.subr.bf16.mxu0 0
        %1134 = vmatpush1.bf16.msra.mxu0 0
        %1135 = vmatprep.subr.bf16.mxu0 0
        %1136 = vmatpush1.bf16.msra.mxu0 0
        %1137 = vmatprep.subr.bf16.mxu0 0
        %1138 = vmatpush1.bf16.msra.mxu0 0
        %1139 = vmatprep.subr.bf16.mxu0 0
        %1140 = vmatpush1.bf16.msra.mxu0 0
        %1141 = vmatprep.subr.bf16.mxu0 0
        %1142 = vmatpush1.bf16.msra.mxu0 0
        %1143 = vmatprep.subr.bf16.mxu0 0
        %1144 = vmatpush1.bf16.msra.mxu0 0
        %1145 = vmatprep.subr.bf16.mxu0 0
        %1146 = vmatpush1.bf16.msra.mxu0 0
        %1147 = vmatprep.subr.bf16.mxu0 0
        %1148 = vmatpush1.bf16.msra.mxu0 0
        %1149 = vmatprep.subr.bf16.mxu0 0
        %1150 = vmatpush1.bf16.msra.mxu0 0
        %1151 = vmatprep.subr.bf16.mxu0 0
        %1152 = vmatpush1.bf16.msra.mxu0 0
        %1153 = vmatprep.subr.bf16.mxu0 0
        %1154 = vmatpush1.bf16.msra.mxu0 0
        %1155 = vmatprep.mubr.bf16.mxu0 0
        %1156 = vmatmul.mubr.bf16.gmra.mrb[0].mxu0 %v1121
        %v1157 = vpop.f32.mrb[0].mxu0
        %v1158 = vadd.f32 0.0, %v1157
        %v1159 = vpop.f32.mrb[0].mxu0
        %v1160 = vpop.f32.mrb[0].mxu0
        %v1161 = vpop.f32.mrb[0].mxu0
        %1162 = vdwg.mxu0
        %p1163 = scmp.eq.s32.totalorder %s34, 0
        // Predicated region
        $region69: #{tpu_custom_call.1} parent=43 // pred_check
          %p1164 = pneg %p1163
        $region70: #{tpu_custom_call.1} parent=43 // pred_check_branch
          %1166 = sbr.rel (%p1164) target = $region72
        $region71: #{tpu_custom_call.1} parent=43 // pred_region
          %1167 = vst.msk [vmem:[%s418] sm:$0xff] %vm580, %v1158
        $region72: #{tpu_custom_call.1} parent=43 // pred_fallthru
          _
        %p1168 = scmp.ne.s32.totalorder %s34, 0
        // Predicated region
        $region73: #{tpu_custom_call.1} parent=43 // pred_check
          %p1169 = pneg %p1168
        $region74: #{tpu_custom_call.1} parent=43 // pred_check_branch
          %1171 = sbr.rel (%p1169) target = $region76
        $region75: #{tpu_custom_call.1} parent=43 // pred_region
          %v1172 = vld [vmem:[%s418] sm:$0xff]
          %v1173 = vadd.f32 %v1172, %v1158
          %1174 = vst.msk [vmem:[%s418] sm:$0xff] %vm580, %v1173
        $region76: #{tpu_custom_call.1} parent=43 // pred_fallthru
          _
        %s1175 = sand.u32 %s214, 1
        %s1176 = scalar_lea.sflag [#allocation6], %s1175
        %s1177 = sand.u32 %s214, 1
        %s1178 = smul.addr %s1177, 8
        %s1179 = scalar_lea.vmem [#allocation13], %s1178
        // Predicated region
        $region77: #{tpu_custom_call.1} parent=43 // pred_check
          %p1180 = pneg %p224
        $region78: #{tpu_custom_call.1} parent=43 // pred_check_branch
          %1182 = sbr.rel (%p1180) target = $region80
        $region79: #{tpu_custom_call.1} parent=43 // pred_region
          %s1184 = ssub.s32 128, 128
          %1185 = vsyncadd %s1176, %s1184
          %s1186 = sadd.s32 %s33, %s32
          %s1187 = smul.addr %s1186, 128
          %s1188 = scalar_lea.hbm %s6, %s1187
          %s1190 = sshll.u32 %s1179, 4
          %s1191 = int_to_ptr.vmem [resolvable:$true] %s1190
          %1193 = dma.vmem_to_hbm [thread:$0]  %s1191, 128, %s1188, %s1176
        $region80: #{tpu_custom_call.1} parent=43 // pred_fallthru
          _
      $region44: #{tpu_custom_call.1} parent=5 // pred_fallthru
        _
      %p1194 = scmp.le.s32.totalorder 2, %s22
      // Predicated region
      $region81: #{tpu_custom_call.1} parent=5 // pred_check
        %p1195 = pneg %p1194
      $region82: #{tpu_custom_call.1} parent=5 // pred_check_branch
        %1197 = sbr.rel (%p1195) target = $region84
      $region83: #{tpu_custom_call.1} parent=5 // pred_region
        %s1198 = ssub.s32 %s22, 2
        // Predicated region
        $region85: #{tpu_custom_call.1} parent=83 // pred_check
          %p1199 = pneg %p230
        $region86: #{tpu_custom_call.1} parent=83 // pred_check_branch
          %1201 = sbr.rel (%p1199) target = $region88
        $region87: #{tpu_custom_call.1} parent=83 // pred_region
          %s1202 = sand.u32 %s215, 1
          %s1203 = scalar_lea.sflag [#allocation6], %s1202
          %s1204 = sand.u32 %s215, 1
          %s1205 = smul.addr %s1204, 8
          %s1206 = scalar_lea.vmem [#allocation13], %s1205
          %1207 = dma.done %s1203, 128
        $region88: #{tpu_custom_call.1} parent=83 // pred_fallthru
          _
      $region84: #{tpu_custom_call.1} parent=5 // pred_fallthru
        _
    $region6: #{tpu_custom_call.1} parent=1 // loop_footer
      %s26 = sadd.s32 1, %s22
    $region7: #{tpu_custom_call.1} parent=1 // loop_footer_branch
      %21 = sbr.rel target = $region3
    $region8: #{tpu_custom_call.1} parent=1 // loop_exit
      _
    %1208 = vsyncpa [#allocation5], 1
    %s1209 = scalar_lea.sflag [#allocation5], 1
    %1210 = vsyncpa %s1209, 1
    %1211 = vsyncpa [#allocation8], 1
    %s1212 = scalar_lea.sflag [#allocation8], 1
    %1213 = vsyncpa %s1212, 1
    %1214 = vsyncpa [#allocation11], 1
    %1215 = vsyncpa [#allocation6], 1
    %s1216 = scalar_lea.sflag [#allocation6], 1
    %1217 = vsyncpa %s1216, 1

</llo_original>
